<compile_context>
chip_gen: v7x
topology: tpu7x:2x2x1
jax: 0.10.0
libtpu: 0.0.40
codegen_flags: <defaults>
</compile_context>

<pallas_src>
import functools

import jax
import jax.numpy as jnp
from jax.experimental import pallas as pl
from jax.experimental.pallas import tpu as pltpu

LANE = 128          # vreg lane width; pad hidden / outcome dims to this
NEG_BIAS = -1e30    # bias for padded outcome columns -> softmax prob exactly 0


def _round_up(n, m):
    return ((n + m - 1) // m) * m


def _leaky_relu(x, slope=0.02):
    # slope is a weak-typed Python float -> result keeps x.dtype (f32 or bf16).
    return jnp.where(x > 0, x, slope * x)


def _has_bf16_vpu():
    """v6e / v7x have a bf16 VPU; v5e (and older) do not."""
    try:
        kind = jax.devices()[0].device_kind.lower()
    except Exception:
        return False
    return any(tag in kind for tag in ("v6", "v7", "7x"))


def rgan_d_kernel(x_ref,
                  w1_ref, b1_ref,
                  w2_ref, b2_ref,
                  w3_ref, b3_ref,
                  w4_ref, b4_ref,
                  o_ref,
                  *, num_outcomes, bf16_elementwise):
    # bf16 MXU operands, f32 accumulation. Elementwise (bias + LeakyReLU) in
    # bf16 on v6e/v7x, f32 on v5e. Softmax always in f32.
    act_dtype = jnp.bfloat16 if bf16_elementwise else jnp.float32

    x = x_ref[...].astype(jnp.bfloat16)  # no-op if x already arrives as bf16

    def layer(h_in, w_ref, b_ref):
        acc = jnp.dot(h_in, w_ref[...], preferred_element_type=jnp.float32)
        h = acc.astype(act_dtype) + b_ref[...].astype(act_dtype)
        h = _leaky_relu(h)
        return h.astype(jnp.bfloat16)  # next matmul operand

    h = layer(x, w1_ref, b1_ref)
    h = layer(h, w2_ref, b2_ref)
    h = layer(h, w3_ref, b3_ref)

    # Final linear layer + numerically-stable softmax, in f32. Padded outcome
    # columns carry a -1e30 bias, so exp() underflows them to exactly 0.
    logits = jnp.dot(h, w4_ref[...], preferred_element_type=jnp.float32) + b4_ref[...]
    m = jnp.max(logits, axis=-1, keepdims=True)
    e = jnp.exp(logits - m)
    denom = jnp.sum(e, axis=-1, keepdims=True)
    probs = e / denom                      # exact divide -> rows sum to 1

    # Store only the logical outcome columns (lane-masked store; store slot is
    # not the binding resource — saves ~8x output HBM writeback vs padded f32).
    o_ref[...] = probs[:, :num_outcomes]


def pack_params(params):
    """Pad hidden/outcome dims to LANE, cast weights to bf16 (biases stay f32)."""
    (w1, b1), (w2, b2), (w3, b3), (w4, b4) = (
        params["L1"], params["L2"], params["L3"], params["L4"])
    in_size, hidden = w1.shape
    num_outcomes = w4.shape[1]
    hp = _round_up(hidden, LANE)
    op = _round_up(num_outcomes, LANE)

    def pad2(a, rows, cols, fill=0.0):
        return jnp.pad(a, ((0, rows - a.shape[0]), (0, cols - a.shape[1])),
                       constant_values=fill)

    w1p = pad2(w1, in_size, hp).astype(jnp.bfloat16)
    b1p = pad2(b1, 1, hp)
    w2p = pad2(w2, hp, hp).astype(jnp.bfloat16)
    b2p = pad2(b2, 1, hp)
    w3p = pad2(w3, hp, hp).astype(jnp.bfloat16)
    b3p = pad2(b3, 1, hp)
    w4p = pad2(w4, hp, op).astype(jnp.bfloat16)
    b4p = pad2(b4, 1, op, fill=NEG_BIAS)  # kill padded outcome columns (f32!)
    return (w1p, b1p, w2p, b2p, w3p, b3p, w4p, b4p)


def rgan_d_forward(x, packed, num_outcomes, *, tile_b=2048, bf16_elementwise=None):
    """x: [B, in_size] (f32 or bf16). packed: pack_params output.
    Returns [B, num_outcomes] f32 softmax probabilities."""
    w1, b1, w2, b2, w3, b3, w4, b4 = packed
    B, in_size = x.shape
    hp = w1.shape[1]
    outp = w4.shape[1]

    if bf16_elementwise is None:
        bf16_elementwise = _has_bf16_vpu()

    # Stream x to the kernel as bf16 (it is cast to bf16 for the MXU anyway);
    # ideally the producer already emits bf16 — this cast fuses with the pad.
    if x.dtype != jnp.bfloat16:
        x = x.astype(jnp.bfloat16)

    # Grid: at least 2 (even) steps so v7x's two TensorCores share the
    # "parallel" batch axis; tiles capped near tile_b, rows multiple of 8.
    steps = max(2, -(-B // tile_b))          # ceil-div, min 2
    if steps % 2:
        steps += 1                           # even step count -> balanced split
    tile = _round_up(-(-B // steps), 8)
    b_pad = tile * steps
    if b_pad != B:
        x = jnp.pad(x, ((0, b_pad - B), (0, 0)))
    grid = (steps,)

    flops = 2 * b_pad * (in_size * hp + 2 * hp * hp + hp * outp)
    bytes_accessed = (b_pad * in_size * 2            # bf16 x read
                      + b_pad * num_outcomes * 4     # narrow f32 output write
                      + sum(a.size * a.dtype.itemsize for a in packed))
    cost = pl.CostEstimate(flops=flops,
                           transcendentals=b_pad * outp,
                           bytes_accessed=bytes_accessed)

    const2 = lambda i: (0, 0)  # weights/biases: same block every step -> resident
    kernel = functools.partial(rgan_d_kernel,
                               num_outcomes=num_outcomes,
                               bf16_elementwise=bf16_elementwise)

    out = pl.pallas_call(
        kernel,
        out_shape=jax.ShapeDtypeStruct((b_pad, num_outcomes), jnp.float32),
        grid=grid,
        in_specs=[
            pl.BlockSpec((tile, in_size), lambda i: (i, 0)),
            pl.BlockSpec(w1.shape, const2), pl.BlockSpec(b1.shape, const2),
            pl.BlockSpec(w2.shape, const2), pl.BlockSpec(b2.shape, const2),
            pl.BlockSpec(w3.shape, const2), pl.BlockSpec(b3.shape, const2),
            pl.BlockSpec(w4.shape, const2), pl.BlockSpec(b4.shape, const2),
        ],
        out_specs=pl.BlockSpec((tile, num_outcomes), lambda i: (i, 0)),
        compiler_params=pltpu.CompilerParams(
            dimension_semantics=("parallel",)),
        cost_estimate=cost,
    )(x, w1, b1, w2, b2, w3, b3, w4, b4)

    return out[:B]  # row-slice only; columns are already the logical width


def init_params(key, in_size, hidden_size, num_outcomes):
    """PyTorch-Linear-like uniform fan-in init; weights stored [in, out]."""
    def linear(k, fan_in, fan_out):
        kw, kb = jax.random.split(k)
        bound = 1.0 / jnp.sqrt(fan_in)
        w = jax.random.uniform(kw, (fan_in, fan_out), jnp.float32, -bound, bound)
        b = jax.random.uniform(kb, (1, fan_out), jnp.float32, -bound, bound)
        return w, b

    k1, k2, k3, k4 = jax.random.split(key, 4)
    return {
        "L1": linear(k1, in_size, hidden_size),
        "L2": linear(k2, hidden_size, hidden_size),
        "L3": linear(k3, hidden_size, hidden_size),
        "L4": linear(k4, hidden_size, num_outcomes),
    }


def rgan_d_reference(x, params):
    """Pure-JAX f32 reference for correctness check."""
    h = x
    for name in ("L1", "L2", "L3"):
        w, b = params[name]
        h = h @ w + b
        h = jnp.where(h > 0, h, 0.02 * h)
    w, b = params["L4"]
    logits = h @ w + b
    return jax.nn.softmax(logits, axis=-1)


if __name__ == "__main__":
    # Small shapes consistent with the module's forward: x is [batch, in_size].
    # B=300 exercises a multi-step grid (2 steps of 152 rows) + batch padding.
    B, in_size, hidden_size, num_outcomes = 300, 64, 32, 16

    key = jax.random.PRNGKey(0)
    kx, kp = jax.random.split(key)
    x = jax.random.normal(kx, (B, in_size), jnp.float32)
    params = init_params(kp, in_size, hidden_size, num_outcomes)
    packed = pack_params(params)

    out = rgan_d_forward(x, packed, num_outcomes)
    out = jax.block_until_ready(out)

    ref = rgan_d_reference(x, params)
    assert out.shape == (B, num_outcomes)
    # bf16 matmul operands / activations -> looser tolerance than pure f32.
    assert jnp.allclose(out, ref, atol=2e-2, rtol=2e-2)
    # Exact softmax divide -> rows sum to 1 up to f32 rounding.
    assert jnp.allclose(jnp.sum(out, axis=-1), jnp.ones((B,)), atol=1e-3)

    print("KERNEL_OK")
</pallas_src>

<mosaic_0001>
module attributes {stable_mosaic.version = 11 : i64} {
  func.func @rgan_d_kernel(%arg0: i32, %arg1: memref<152x64xbf16, #tpu.memory_space<vmem>>, %arg2: memref<64x128xbf16, #tpu.memory_space<vmem>>, %arg3: memref<1x128xf32, #tpu.memory_space<vmem>>, %arg4: memref<128x128xbf16, #tpu.memory_space<vmem>>, %arg5: memref<1x128xf32, #tpu.memory_space<vmem>>, %arg6: memref<128x128xbf16, #tpu.memory_space<vmem>>, %arg7: memref<1x128xf32, #tpu.memory_space<vmem>>, %arg8: memref<128x128xbf16, #tpu.memory_space<vmem>>, %arg9: memref<1x128xf32, #tpu.memory_space<vmem>>, %arg10: memref<152x16xf32, #tpu.memory_space<vmem>>) attributes {dimension_semantics = [#tpu.dimension_semantics<parallel>], iteration_bounds = array<i64: 2>, scalar_prefetch = 0 : i64, scratch_operands = 0 : i64, tpu.core_type = #tpu.core_type<tc>, window_params = [{transform_indices = @transform_0, window_bounds = array<i64: 152, 64>}, {pipeline_mode = #tpu.pipeline_mode<synchronous>, transform_indices = @transform_1, window_bounds = array<i64: 64, 128>}, {pipeline_mode = #tpu.pipeline_mode<synchronous>, transform_indices = @transform_2, window_bounds = array<i64: 1, 128>}, {pipeline_mode = #tpu.pipeline_mode<synchronous>, transform_indices = @transform_3, window_bounds = array<i64: 128, 128>}, {pipeline_mode = #tpu.pipeline_mode<synchronous>, transform_indices = @transform_4, window_bounds = array<i64: 1, 128>}, {pipeline_mode = #tpu.pipeline_mode<synchronous>, transform_indices = @transform_5, window_bounds = array<i64: 128, 128>}, {pipeline_mode = #tpu.pipeline_mode<synchronous>, transform_indices = @transform_6, window_bounds = array<i64: 1, 128>}, {pipeline_mode = #tpu.pipeline_mode<synchronous>, transform_indices = @transform_7, window_bounds = array<i64: 128, 128>}, {pipeline_mode = #tpu.pipeline_mode<synchronous>, transform_indices = @transform_8, window_bounds = array<i64: 1, 128>}, {transform_indices = @transform_9, window_bounds = array<i64: 152, 16>}]} {
    %c0 = arith.constant 0 : index
    %c0_0 = arith.constant 0 : index
    %0 = vector.load %arg1[%c0, %c0_0] : memref<152x64xbf16, #tpu.memory_space<vmem>>, vector<152x64xbf16>
    %c0_1 = arith.constant 0 : index
    %c0_2 = arith.constant 0 : index
    %1 = vector.load %arg2[%c0_1, %c0_2] : memref<64x128xbf16, #tpu.memory_space<vmem>>, vector<64x128xbf16>
    %cst = arith.constant dense<0.000000e+00> : vector<152x128xf32>
    %2 = tpu.matmul %0, %1, %cst {dimension_numbers = #tpu.dot_dimension_numbers<[1], [0], [0], [1], [0, 0, 1, 1], [], []>} : vector<152x64xbf16>, vector<64x128xbf16>, vector<152x128xf32> -> vector<152x128xf32>
    %c0_3 = arith.constant 0 : index
    %c0_4 = arith.constant 0 : index
    %3 = vector.load %arg3[%c0_3, %c0_4] : memref<1x128xf32, #tpu.memory_space<vmem>>, vector<1x128xf32>
    %4 = vector.broadcast %3 : vector<1x128xf32> to vector<152x128xf32>
    %5 = arith.addf %2, %4 : vector<152x128xf32>
    %cst_5 = arith.constant 0.000000e+00 : f32
    %6 = vector.broadcast %cst_5 : f32 to vector<152x128xf32>
    %7 = arith.cmpf ogt, %5, %6 : vector<152x128xf32>
    %cst_6 = arith.constant 2.000000e-02 : f32
    %8 = vector.broadcast %cst_6 : f32 to vector<152x128xf32>
    %9 = arith.mulf %8, %5 : vector<152x128xf32>
    %10 = arith.select %7, %5, %9 : vector<152x128xi1>, vector<152x128xf32>
    %11 = arith.truncf %10 : vector<152x128xf32> to vector<152x128xbf16>
    %c0_7 = arith.constant 0 : index
    %c0_8 = arith.constant 0 : index
    %12 = vector.load %arg4[%c0_7, %c0_8] : memref<128x128xbf16, #tpu.memory_space<vmem>>, vector<128x128xbf16>
    %cst_9 = arith.constant dense<0.000000e+00> : vector<152x128xf32>
    %13 = tpu.matmul %11, %12, %cst_9 {dimension_numbers = #tpu.dot_dimension_numbers<[1], [0], [0], [1], [0, 0, 1, 1], [], []>} : vector<152x128xbf16>, vector<128x128xbf16>, vector<152x128xf32> -> vector<152x128xf32>
    %c0_10 = arith.constant 0 : index
    %c0_11 = arith.constant 0 : index
    %14 = vector.load %arg5[%c0_10, %c0_11] : memref<1x128xf32, #tpu.memory_space<vmem>>, vector<1x128xf32>
    %15 = vector.broadcast %14 : vector<1x128xf32> to vector<152x128xf32>
    %16 = arith.addf %13, %15 : vector<152x128xf32>
    %cst_12 = arith.constant 0.000000e+00 : f32
    %17 = vector.broadcast %cst_12 : f32 to vector<152x128xf32>
    %18 = arith.cmpf ogt, %16, %17 : vector<152x128xf32>
    %cst_13 = arith.constant 2.000000e-02 : f32
    %19 = vector.broadcast %cst_13 : f32 to vector<152x128xf32>
    %20 = arith.mulf %19, %16 : vector<152x128xf32>
    %21 = arith.select %18, %16, %20 : vector<152x128xi1>, vector<152x128xf32>
    %22 = arith.truncf %21 : vector<152x128xf32> to vector<152x128xbf16>
    %c0_14 = arith.constant 0 : index
    %c0_15 = arith.constant 0 : index
    %23 = vector.load %arg6[%c0_14, %c0_15] : memref<128x128xbf16, #tpu.memory_space<vmem>>, vector<128x128xbf16>
    %cst_16 = arith.constant dense<0.000000e+00> : vector<152x128xf32>
    %24 = tpu.matmul %22, %23, %cst_16 {dimension_numbers = #tpu.dot_dimension_numbers<[1], [0], [0], [1], [0, 0, 1, 1], [], []>} : vector<152x128xbf16>, vector<128x128xbf16>, vector<152x128xf32> -> vector<152x128xf32>
    %c0_17 = arith.constant 0 : index
    %c0_18 = arith.constant 0 : index
    %25 = vector.load %arg7[%c0_17, %c0_18] : memref<1x128xf32, #tpu.memory_space<vmem>>, vector<1x128xf32>
    %26 = vector.broadcast %25 : vector<1x128xf32> to vector<152x128xf32>
    %27 = arith.addf %24, %26 : vector<152x128xf32>
    %cst_19 = arith.constant 0.000000e+00 : f32
    %28 = vector.broadcast %cst_19 : f32 to vector<152x128xf32>
    %29 = arith.cmpf ogt, %27, %28 : vector<152x128xf32>
    %cst_20 = arith.constant 2.000000e-02 : f32
    %30 = vector.broadcast %cst_20 : f32 to vector<152x128xf32>
    %31 = arith.mulf %30, %27 : vector<152x128xf32>
    %32 = arith.select %29, %27, %31 : vector<152x128xi1>, vector<152x128xf32>
    %33 = arith.truncf %32 : vector<152x128xf32> to vector<152x128xbf16>
    %c0_21 = arith.constant 0 : index
    %c0_22 = arith.constant 0 : index
    %34 = vector.load %arg8[%c0_21, %c0_22] : memref<128x128xbf16, #tpu.memory_space<vmem>>, vector<128x128xbf16>
    %cst_23 = arith.constant dense<0.000000e+00> : vector<152x128xf32>
    %35 = tpu.matmul %33, %34, %cst_23 {dimension_numbers = #tpu.dot_dimension_numbers<[1], [0], [0], [1], [0, 0, 1, 1], [], []>} : vector<152x128xbf16>, vector<128x128xbf16>, vector<152x128xf32> -> vector<152x128xf32>
    %c0_24 = arith.constant 0 : index
    %c0_25 = arith.constant 0 : index
    %36 = vector.load %arg9[%c0_24, %c0_25] : memref<1x128xf32, #tpu.memory_space<vmem>>, vector<1x128xf32>
    %37 = vector.broadcast %36 : vector<1x128xf32> to vector<152x128xf32>
    %38 = arith.addf %35, %37 : vector<152x128xf32>
    %cst_26 = arith.constant dense<0xFF800000> : vector<152xf32>
    %39 = vector.multi_reduction <maximumf>, %38, %cst_26 [1] : vector<152x128xf32> to vector<152xf32>
    %40 = vector.shape_cast %39 : vector<152xf32> to vector<152x1xf32>
    %41 = vector.broadcast %40 : vector<152x1xf32> to vector<152x128xf32>
    %42 = arith.subf %38, %41 : vector<152x128xf32>
    %43 = math.exp %42 : vector<152x128xf32>
    %cst_27 = arith.constant dense<0.000000e+00> : vector<152xf32>
    %44 = vector.multi_reduction <add>, %43, %cst_27 [1] : vector<152x128xf32> to vector<152xf32>
    %45 = vector.shape_cast %44 : vector<152xf32> to vector<152x1xf32>
    %46 = vector.broadcast %45 : vector<152x1xf32> to vector<152x128xf32>
    %47 = arith.divf %43, %46 : vector<152x128xf32>
    %48 = vector.extract_strided_slice %47 {offsets = [0, 0], sizes = [152, 16], strides = [1, 1]} : vector<152x128xf32> to vector<152x16xf32>
    %c0_28 = arith.constant 0 : index
    %c0_29 = arith.constant 0 : index
    %49 = vector.load %arg10[%c0_28, %c0_29] : memref<152x16xf32, #tpu.memory_space<vmem>>, vector<152x16xf32>
    tpu.vector_store %arg10[%c0_28, %c0_29], %48 {strides = array<i32>} : memref<152x16xf32, #tpu.memory_space<vmem>>, vector<152x16xf32>,
    return
  }
  func.func @transform_0(%arg0: i32) -> (i32, i32) {
    %c0_i32 = arith.constant 0 : i32
    %c0_i32_0 = arith.constant 0 : i32
    return %arg0, %c0_i32 : i32, i32
  }
  func.func @transform_1(%arg0: i32) -> (i32, i32) {
    %c0_i32 = arith.constant 0 : i32
    %c0_i32_0 = arith.constant 0 : i32
    %c0_i32_1 = arith.constant 0 : i32
    return %c0_i32, %c0_i32_0 : i32, i32
  }
  func.func @transform_2(%arg0: i32) -> (i32, i32) {
    %c0_i32 = arith.constant 0 : i32
    %c0_i32_0 = arith.constant 0 : i32
    %c0_i32_1 = arith.constant 0 : i32
    return %c0_i32, %c0_i32_0 : i32, i32
  }
  func.func @transform_3(%arg0: i32) -> (i32, i32) {
    %c0_i32 = arith.constant 0 : i32
    %c0_i32_0 = arith.constant 0 : i32
    %c0_i32_1 = arith.constant 0 : i32
    return %c0_i32, %c0_i32_0 : i32, i32
  }
  func.func @transform_4(%arg0: i32) -> (i32, i32) {
    %c0_i32 = arith.constant 0 : i32
    %c0_i32_0 = arith.constant 0 : i32
    %c0_i32_1 = arith.constant 0 : i32
    return %c0_i32, %c0_i32_0 : i32, i32
  }
  func.func @transform_5(%arg0: i32) -> (i32, i32) {
    %c0_i32 = arith.constant 0 : i32
    %c0_i32_0 = arith.constant 0 : i32
    %c0_i32_1 = arith.constant 0 : i32
    return %c0_i32, %c0_i32_0 : i32, i32
  }
  func.func @transform_6(%arg0: i32) -> (i32, i32) {
    %c0_i32 = arith.constant 0 : i32
    %c0_i32_0 = arith.constant 0 : i32
    %c0_i32_1 = arith.constant 0 : i32
    return %c0_i32, %c0_i32_0 : i32, i32
  }
  func.func @transform_7(%arg0: i32) -> (i32, i32) {
    %c0_i32 = arith.constant 0 : i32
    %c0_i32_0 = arith.constant 0 : i32
    %c0_i32_1 = arith.constant 0 : i32
    return %c0_i32, %c0_i32_0 : i32, i32
  }
  func.func @transform_8(%arg0: i32) -> (i32, i32) {
    %c0_i32 = arith.constant 0 : i32
    %c0_i32_0 = arith.constant 0 : i32
    %c0_i32_1 = arith.constant 0 : i32
    return %c0_i32, %c0_i32_0 : i32, i32
  }
  func.func @transform_9(%arg0: i32) -> (i32, i32) {
    %c0_i32 = arith.constant 0 : i32
    %c0_i32_0 = arith.constant 0 : i32
    return %arg0, %c0_i32 : i32, i32
  }
}

</mosaic_0001>

<llo_original>
// kernel: tpu_custom_call.1
$region0: #{tpu_custom_call.1}
  #allocation0 [shape = 'u32[]', space=smem, size = 0x4, offset = 0x4, fixed_abs, tag = 'smem constant byte address 0x4 - core index']
  #allocation1 [shape = 'u32[144,128]{1,0:T(1,128)}', space=vmem, size = 0x12000, scoped, tag = 'internal scratch']
  %s0 = inlined_call_operand.vmem [shape: bf16[304,64], index: 0, kind: input, shape index: {}]
  %s1 = inlined_call_operand.vmem [shape: bf16[64,128], index: 1, kind: input, shape index: {}]
  %s2 = inlined_call_operand.vmem [shape: f32[1,128], index: 2, kind: input, shape index: {}]
  %s3 = inlined_call_operand.vmem [shape: bf16[128,128], index: 3, kind: input, shape index: {}]
  %s4 = inlined_call_operand.vmem [shape: f32[1,128], index: 4, kind: input, shape index: {}]
  %s5 = inlined_call_operand.vmem [shape: bf16[128,128], index: 5, kind: input, shape index: {}]
  %s6 = inlined_call_operand.vmem [shape: f32[1,128], index: 6, kind: input, shape index: {}]
  %s7 = inlined_call_operand.vmem [shape: bf16[128,128], index: 7, kind: input, shape index: {}]
  %s8 = inlined_call_operand.vmem [shape: f32[1,128], index: 8, kind: input, shape index: {}]
  %s9 = inlined_call_operand.vmem [shape: f32[304,16], index: 9, kind: output, shape index: {}]
  %s10 = sld [smem:[#allocation0]]
  $region69: #{tpu_custom_call.1} parent=0
    _
  %s12 = ssub.s32 1, %s10
  %s13 = scalar_select 0, %s12, %s10
  loop: start=0, step=1, limit=4
  $region2: #{tpu_custom_call.1} parent=0 // loop_pre_header
    _
  $region3: #{tpu_custom_call.1} parent=0 // loop_header
    %s15 = sphi 0, %s19
    %p16 = scmp.ge.s32.totalorder %s15, 4
    %s25 = sphi 0, %s27
    %s28 = sphi 0, %s25
    %s29 = sphi 0, %s28
    %s45 = sphi 0, %s29
    %s49 = sphi 0, %s49
    %s51 = sphi 0, %s49
    %s52 = sphi 0, %s51
    %s66 = sphi 0, %s52
    %s70 = sphi 0, %s70
    %s72 = sphi 0, %s70
    %s73 = sphi 0, %s72
    %s87 = sphi 0, %s73
    %s91 = sphi 0, %s91
    %s93 = sphi 0, %s91
    %s94 = sphi 0, %s93
    %s108 = sphi 0, %s94
    %s112 = sphi 0, %s112
    %s114 = sphi 0, %s112
    %s115 = sphi 0, %s114
    %s129 = sphi 0, %s115
    %s133 = sphi 0, %s133
    %s135 = sphi 0, %s133
    %s136 = sphi 0, %s135
    %s150 = sphi 0, %s136
    %s154 = sphi 0, %s154
    %s156 = sphi 0, %s154
    %s157 = sphi 0, %s156
    %s171 = sphi 0, %s157
    %s175 = sphi 0, %s175
    %s177 = sphi 0, %s175
    %s178 = sphi 0, %s177
    %s192 = sphi 0, %s178
    %s196 = sphi 0, %s196
    %s198 = sphi 0, %s196
    %s199 = sphi 0, %s198
    %s213 = sphi 0, %s199
    %s219 = sphi 0, %s221
    %s222 = sphi 0, %s219
    %s223 = sphi 0, %s222
    %s239 = sphi 0, %s223
  $region4: #{tpu_custom_call.1} parent=0 // loop_header_branch
    %18 = sbr.rel (%p16) target = $region8
  $region5: #{tpu_custom_call.1} parent=0 // loop_body
    %s20 = ssub.s32 %s15, 1
    %s21 = ssub.s32 %s15, 2
    %s22 = sadd.s32 %s15, 1
    %s23 = ssub.s32 %s15, %s22
    %p24 = scmp.eq.s32.totalorder %s23, 0
    %s26 = sadd.s32 %s25, 1
    %s27 = scalar_select %p24, %s25, %s26
    %p30 = pneg %p24
    %p31 = scmp.eq.s32.totalorder %s15, 1
    %p32 = por %p30, %p31
    %p33 = scmp.ne.s32.totalorder %s25, %s28
    %p34 = scmp.eq.s32.totalorder %s15, 0
    %p35 = por %p33, %p34
    %p36 = scmp.ne.s32.totalorder %s25, %s28
    %p37 = scmp.eq.s32.totalorder %s20, 1
    %p38 = por %p36, %p37
    %p39 = scmp.ne.s32.totalorder %s28, %s29
    %p40 = scmp.eq.s32.totalorder %s20, 0
    %p41 = por %p39, %p40
    %p42 = scmp.ne.s32.totalorder %s28, %s29
    %p43 = scmp.eq.s32.totalorder %s21, 1
    %p44 = por %p42, %p43
    %p46 = scmp.ne.s32.totalorder %s29, %s45
    %p47 = scmp.eq.s32.totalorder %s21, 0
    %p48 = por %p46, %p47
    %s50 = sadd.s32 %s49, 1
    %p53 = scmp.eq.s32.totalorder %s15, 1
    %p54 = scmp.ne.s32.totalorder %s49, %s51
    %p55 = scmp.eq.s32.totalorder %s15, 0
    %p56 = por %p54, %p55
    %p57 = scmp.ne.s32.totalorder %s49, %s51
    %p58 = scmp.eq.s32.totalorder %s20, 1
    %p59 = por %p57, %p58
    %p60 = scmp.ne.s32.totalorder %s51, %s52
    %p61 = scmp.eq.s32.totalorder %s20, 0
    %p62 = por %p60, %p61
    %p63 = scmp.ne.s32.totalorder %s51, %s52
    %p64 = scmp.eq.s32.totalorder %s21, 1
    %p65 = por %p63, %p64
    %p67 = scmp.ne.s32.totalorder %s52, %s66
    %p68 = scmp.eq.s32.totalorder %s21, 0
    %p69 = por %p67, %p68
    %s71 = sadd.s32 %s70, 1
    %p74 = scmp.eq.s32.totalorder %s15, 1
    %p75 = scmp.ne.s32.totalorder %s70, %s72
    %p76 = scmp.eq.s32.totalorder %s15, 0
    %p77 = por %p75, %p76
    %p78 = scmp.ne.s32.totalorder %s70, %s72
    %p79 = scmp.eq.s32.totalorder %s20, 1
    %p80 = por %p78, %p79
    %p81 = scmp.ne.s32.totalorder %s72, %s73
    %p82 = scmp.eq.s32.totalorder %s20, 0
    %p83 = por %p81, %p82
    %p84 = scmp.ne.s32.totalorder %s72, %s73
    %p85 = scmp.eq.s32.totalorder %s21, 1
    %p86 = por %p84, %p85
    %p88 = scmp.ne.s32.totalorder %s73, %s87
    %p89 = scmp.eq.s32.totalorder %s21, 0
    %p90 = por %p88, %p89
    %s92 = sadd.s32 %s91, 1
    %p95 = scmp.eq.s32.totalorder %s15, 1
    %p96 = scmp.ne.s32.totalorder %s91, %s93
    %p97 = scmp.eq.s32.totalorder %s15, 0
    %p98 = por %p96, %p97
    %p99 = scmp.ne.s32.totalorder %s91, %s93
    %p100 = scmp.eq.s32.totalorder %s20, 1
    %p101 = por %p99, %p100
    %p102 = scmp.ne.s32.totalorder %s93, %s94
    %p103 = scmp.eq.s32.totalorder %s20, 0
    %p104 = por %p102, %p103
    %p105 = scmp.ne.s32.totalorder %s93, %s94
    %p106 = scmp.eq.s32.totalorder %s21, 1
    %p107 = por %p105, %p106
    %p109 = scmp.ne.s32.totalorder %s94, %s108
    %p110 = scmp.eq.s32.totalorder %s21, 0
    %p111 = por %p109, %p110
    %s113 = sadd.s32 %s112, 1
    %p116 = scmp.eq.s32.totalorder %s15, 1
    %p117 = scmp.ne.s32.totalorder %s112, %s114
    %p118 = scmp.eq.s32.totalorder %s15, 0
    %p119 = por %p117, %p118
    %p120 = scmp.ne.s32.totalorder %s112, %s114
    %p121 = scmp.eq.s32.totalorder %s20, 1
    %p122 = por %p120, %p121
    %p123 = scmp.ne.s32.totalorder %s114, %s115
    %p124 = scmp.eq.s32.totalorder %s20, 0
    %p125 = por %p123, %p124
    %p126 = scmp.ne.s32.totalorder %s114, %s115
    %p127 = scmp.eq.s32.totalorder %s21, 1
    %p128 = por %p126, %p127
    %p130 = scmp.ne.s32.totalorder %s115, %s129
    %p131 = scmp.eq.s32.totalorder %s21, 0
    %p132 = por %p130, %p131
    %s134 = sadd.s32 %s133, 1
    %p137 = scmp.eq.s32.totalorder %s15, 1
    %p138 = scmp.ne.s32.totalorder %s133, %s135
    %p139 = scmp.eq.s32.totalorder %s15, 0
    %p140 = por %p138, %p139
    %p141 = scmp.ne.s32.totalorder %s133, %s135
    %p142 = scmp.eq.s32.totalorder %s20, 1
    %p143 = por %p141, %p142
    %p144 = scmp.ne.s32.totalorder %s135, %s136
    %p145 = scmp.eq.s32.totalorder %s20, 0
    %p146 = por %p144, %p145
    %p147 = scmp.ne.s32.totalorder %s135, %s136
    %p148 = scmp.eq.s32.totalorder %s21, 1
    %p149 = por %p147, %p148
    %p151 = scmp.ne.s32.totalorder %s136, %s150
    %p152 = scmp.eq.s32.totalorder %s21, 0
    %p153 = por %p151, %p152
    %s155 = sadd.s32 %s154, 1
    %p158 = scmp.eq.s32.totalorder %s15, 1
    %p159 = scmp.ne.s32.totalorder %s154, %s156
    %p160 = scmp.eq.s32.totalorder %s15, 0
    %p161 = por %p159, %p160
    %p162 = scmp.ne.s32.totalorder %s154, %s156
    %p163 = scmp.eq.s32.totalorder %s20, 1
    %p164 = por %p162, %p163
    %p165 = scmp.ne.s32.totalorder %s156, %s157
    %p166 = scmp.eq.s32.totalorder %s20, 0
    %p167 = por %p165, %p166
    %p168 = scmp.ne.s32.totalorder %s156, %s157
    %p169 = scmp.eq.s32.totalorder %s21, 1
    %p170 = por %p168, %p169
    %p172 = scmp.ne.s32.totalorder %s157, %s171
    %p173 = scmp.eq.s32.totalorder %s21, 0
    %p174 = por %p172, %p173
    %s176 = sadd.s32 %s175, 1
    %p179 = scmp.eq.s32.totalorder %s15, 1
    %p180 = scmp.ne.s32.totalorder %s175, %s177
    %p181 = scmp.eq.s32.totalorder %s15, 0
    %p182 = por %p180, %p181
    %p183 = scmp.ne.s32.totalorder %s175, %s177
    %p184 = scmp.eq.s32.totalorder %s20, 1
    %p185 = por %p183, %p184
    %p186 = scmp.ne.s32.totalorder %s177, %s178
    %p187 = scmp.eq.s32.totalorder %s20, 0
    %p188 = por %p186, %p187
    %p189 = scmp.ne.s32.totalorder %s177, %s178
    %p190 = scmp.eq.s32.totalorder %s21, 1
    %p191 = por %p189, %p190
    %p193 = scmp.ne.s32.totalorder %s178, %s192
    %p194 = scmp.eq.s32.totalorder %s21, 0
    %p195 = por %p193, %p194
    %s197 = sadd.s32 %s196, 1
    %p200 = scmp.eq.s32.totalorder %s15, 1
    %p201 = scmp.ne.s32.totalorder %s196, %s198
    %p202 = scmp.eq.s32.totalorder %s15, 0
    %p203 = por %p201, %p202
    %p204 = scmp.ne.s32.totalorder %s196, %s198
    %p205 = scmp.eq.s32.totalorder %s20, 1
    %p206 = por %p204, %p205
    %p207 = scmp.ne.s32.totalorder %s198, %s199
    %p208 = scmp.eq.s32.totalorder %s20, 0
    %p209 = por %p207, %p208
    %p210 = scmp.ne.s32.totalorder %s198, %s199
    %p211 = scmp.eq.s32.totalorder %s21, 1
    %p212 = por %p210, %p211
    %p214 = scmp.ne.s32.totalorder %s199, %s213
    %p215 = scmp.eq.s32.totalorder %s21, 0
    %p216 = por %p214, %p215
    %s217 = ssub.s32 %s15, %s22
    %p218 = scmp.eq.s32.totalorder %s217, 0
    %s220 = sadd.s32 %s219, 1
    %s221 = scalar_select %p218, %s219, %s220
    %p224 = pneg %p218
    %p225 = scmp.eq.s32.totalorder %s15, 1
    %p226 = por %p224, %p225
    %p227 = scmp.ne.s32.totalorder %s219, %s222
    %p228 = scmp.eq.s32.totalorder %s15, 0
    %p229 = por %p227, %p228
    %p230 = scmp.ne.s32.totalorder %s219, %s222
    %p231 = scmp.eq.s32.totalorder %s20, 1
    %p232 = por %p230, %p231
    %p233 = scmp.ne.s32.totalorder %s222, %s223
    %p234 = scmp.eq.s32.totalorder %s20, 0
    %p235 = por %p233, %p234
    %p236 = scmp.ne.s32.totalorder %s222, %s223
    %p237 = scmp.eq.s32.totalorder %s21, 1
    %p238 = por %p236, %p237
    %p240 = scmp.ne.s32.totalorder %s223, %s239
    %p241 = scmp.eq.s32.totalorder %s21, 0
    %p242 = por %p240, %p241
    %p243 = scmp.le.s32.totalorder 1, %s15
    %p244 = scmp.lt.s32.totalorder %s15, 3
    %p245 = pnand %p243, %p244
    %p246 = pneg %p245
    // Predicated region
    $region9: #{tpu_custom_call.1} parent=5 // pred_check
      _
    $region10: #{tpu_custom_call.1} parent=5 // pred_check_branch
      %248 = sbr.rel (%p245) target = $region12
    $region11: #{tpu_custom_call.1} parent=5 // pred_region
      %s249 = ssub.s32 %s15, 1
      // Predicated region
      $region13: #{tpu_custom_call.1} parent=11 // pred_check
        %p250 = pneg %p62
      $region14: #{tpu_custom_call.1} parent=11 // pred_check_branch
        %252 = sbr.rel (%p250) target = $region16
      $region15: #{tpu_custom_call.1} parent=11 // pred_region
        _
      $region16: #{tpu_custom_call.1} parent=11 // pred_fallthru
        _
      // Predicated region
      $region17: #{tpu_custom_call.1} parent=11 // pred_check
        %p253 = pneg %p83
      $region18: #{tpu_custom_call.1} parent=11 // pred_check_branch
        %255 = sbr.rel (%p253) target = $region20
      $region19: #{tpu_custom_call.1} parent=11 // pred_region
        _
      $region20: #{tpu_custom_call.1} parent=11 // pred_fallthru
        _
      // Predicated region
      $region21: #{tpu_custom_call.1} parent=11 // pred_check
        %p256 = pneg %p104
      $region22: #{tpu_custom_call.1} parent=11 // pred_check_branch
        %258 = sbr.rel (%p256) target = $region24
      $region23: #{tpu_custom_call.1} parent=11 // pred_region
        _
      $region24: #{tpu_custom_call.1} parent=11 // pred_fallthru
        _
      // Predicated region
      $region25: #{tpu_custom_call.1} parent=11 // pred_check
        %p259 = pneg %p125
      $region26: #{tpu_custom_call.1} parent=11 // pred_check_branch
        %261 = sbr.rel (%p259) target = $region28
      $region27: #{tpu_custom_call.1} parent=11 // pred_region
        _
      $region28: #{tpu_custom_call.1} parent=11 // pred_fallthru
        _
      // Predicated region
      $region29: #{tpu_custom_call.1} parent=11 // pred_check
        %p262 = pneg %p146
      $region30: #{tpu_custom_call.1} parent=11 // pred_check_branch
        %264 = sbr.rel (%p262) target = $region32
      $region31: #{tpu_custom_call.1} parent=11 // pred_region
        _
      $region32: #{tpu_custom_call.1} parent=11 // pred_fallthru
        _
      // Predicated region
      $region33: #{tpu_custom_call.1} parent=11 // pred_check
        %p265 = pneg %p167
      $region34: #{tpu_custom_call.1} parent=11 // pred_check_branch
        %267 = sbr.rel (%p265) target = $region36
      $region35: #{tpu_custom_call.1} parent=11 // pred_region
        _
      $region36: #{tpu_custom_call.1} parent=11 // pred_fallthru
        _
      // Predicated region
      $region37: #{tpu_custom_call.1} parent=11 // pred_check
        %p268 = pneg %p188
      $region38: #{tpu_custom_call.1} parent=11 // pred_check_branch
        %270 = sbr.rel (%p268) target = $region40
      $region39: #{tpu_custom_call.1} parent=11 // pred_region
        _
      $region40: #{tpu_custom_call.1} parent=11 // pred_fallthru
        _
      // Predicated region
      $region41: #{tpu_custom_call.1} parent=11 // pred_check
        %p271 = pneg %p209
      $region42: #{tpu_custom_call.1} parent=11 // pred_check_branch
        %273 = sbr.rel (%p271) target = $region44
      $region43: #{tpu_custom_call.1} parent=11 // pred_region
        _
      $region44: #{tpu_custom_call.1} parent=11 // pred_fallthru
        _
    $region12: #{tpu_custom_call.1} parent=5 // pred_fallthru
      _
    %p274 = scmp.lt.s32.totalorder %s15, 2
    // Predicated region
    $region45: #{tpu_custom_call.1} parent=5 // pred_check
      %p275 = pneg %p274
    $region46: #{tpu_custom_call.1} parent=5 // pred_check_branch
      %277 = sbr.rel (%p275) target = $region48
    $region47: #{tpu_custom_call.1} parent=5 // pred_region
      // Predicated region
      $region49: #{tpu_custom_call.1} parent=47 // pred_check
        %p278 = pneg %p35
      $region50: #{tpu_custom_call.1} parent=47 // pred_check_branch
        %280 = sbr.rel (%p278) target = $region52
      $region51: #{tpu_custom_call.1} parent=47 // pred_region
        %s281 = smul.u32 19, %s15
        %p282 = scmp.lt.s32.totalorder %s281, 37
        %s283 = scalar_select %p282, %s281, 37
        %s284 = smul.addr %s283, 4
        %s285 = scalar_lea.vmem %s0, %s284
        %s286 = smul.u32 19, %s15
      $region52: #{tpu_custom_call.1} parent=47 // pred_fallthru
        _
    $region48: #{tpu_custom_call.1} parent=5 // pred_fallthru
      _
    %p287 = scmp.le.s32.totalorder 1, %s15
    %p288 = scmp.lt.s32.totalorder %s15, 3
    %p289 = pnand %p287, %p288
    %p290 = pneg %p289
    // Predicated region
    $region53: #{tpu_custom_call.1} parent=5 // pred_check
      _
    $region54: #{tpu_custom_call.1} parent=5 // pred_check_branch
      %292 = sbr.rel (%p289) target = $region56
    $region55: #{tpu_custom_call.1} parent=5 // pred_region
      %s293 = ssub.s32 %s15, 1
      %s294 = smul.u32 19, %s20
      %p295 = scmp.lt.s32.totalorder %s294, 37
      %s296 = scalar_select %p295, %s294, 37
      %s297 = smul.addr %s296, 4
      %s298 = scalar_lea.vmem %s0, %s297
      %p299 = pneg %p41
      %p300 = pneg %p38
      %p301 = pneg %p62
      %p302 = pneg %p59
      %p303 = pneg %p83
      %p304 = pneg %p80
      %p305 = pneg %p104
      %p306 = pneg %p101
      %p307 = pneg %p125
      %p308 = pneg %p122
      %p309 = pneg %p146
      %p310 = pneg %p143
      %p311 = pneg %p167
      %p312 = pneg %p164
      %p313 = pneg %p188
      %p314 = pneg %p185
      %p315 = pneg %p209
      %p316 = pneg %p206
      %p317 = pneg %p235
      %p318 = pneg %p232
      %s319 = smul.u32 19, %s20
      %p320 = scmp.lt.s32.totalorder %s319, 37
      %s321 = scalar_select %p320, %s319, 37
      %s322 = smul.addr %s321, 8
      %s323 = scalar_lea.vmem %s9, %s322
      %s324 = smul.u32 19, %s20
      %p325 = scmp.lt.s32.totalorder %s324, 37
      %s326 = scalar_select %p325, %s324, 37
      %s327 = smul.addr %s326, 4
      %s328 = scalar_lea.vmem %s0, %s327
      %s329 = smul.u32 19, %s20
      %s330 = smul.u32 19, %s20
      %p331 = scmp.lt.s32.totalorder %s330, 37
      %s332 = scalar_select %p331, %s330, 37
      %s333 = smul.addr %s332, 8
      %s334 = scalar_lea.vmem %s9, %s333
      %s335 = smul.u32 19, %s20
      %v337 = vld [vmem:[%s328] sm:$0xf]
      %v338 = vld [vmem:[%s328 + $0x4] sm:$0xf]
      %v339 = vld [vmem:[%s328 + $0x8] sm:$0xf]
      %v340 = vld [vmem:[%s328 + $0xc] sm:$0xf]
      %v341 = vld [vmem:[%s328 + $0x10] sm:$0xf]
      %v342 = vld [vmem:[%s328 + $0x14] sm:$0xf]
      %v343 = vld [vmem:[%s328 + $0x18] sm:$0xf]
      %v344 = vld [vmem:[%s328 + $0x1c] sm:$0xf]
      %v345 = vld [vmem:[%s328 + $0x20] sm:$0xf]
      %v346 = vld [vmem:[%s328 + $0x24] sm:$0xf]
      %v347 = vld [vmem:[%s328 + $0x28] sm:$0xf]
      %v348 = vld [vmem:[%s328 + $0x2c] sm:$0xf]
      %v349 = vld [vmem:[%s328 + $0x30] sm:$0xf]
      %v350 = vld [vmem:[%s328 + $0x34] sm:$0xf]
      %v351 = vld [vmem:[%s328 + $0x38] sm:$0xf]
      %v352 = vld [vmem:[%s328 + $0x3c] sm:$0xf]
      %v353 = vld [vmem:[%s328 + $0x40] sm:$0xf]
      %v354 = vld [vmem:[%s328 + $0x44] sm:$0xf]
      %v355 = vld [vmem:[%s328 + $0x48] sm:$0xf]
      %v356 = vld [vmem:[%s1] sm:$0xf]
      %v357 = vld [vmem:[%s1 + $0x4] sm:$0xf]
      %v358 = vld [vmem:[%s1 + $0x8] sm:$0xf]
      %v359 = vld [vmem:[%s1 + $0xc] sm:$0xf]
      %v360 = vld [vmem:[%s1 + $0x10] sm:$0xf]
      %v361 = vld [vmem:[%s1 + $0x14] sm:$0xf]
      %v362 = vld [vmem:[%s1 + $0x18] sm:$0xf]
      %v363 = vld [vmem:[%s1 + $0x1c] sm:$0xf]
      %v364 = vld [vmem:[%s2] sm:$0x1]
      %v366 = vlaneseq
      %v367 = vshrl.u32 %v366, 7
      %v368 = vsub.s32 0, %v367
      %v369 = vrot.slane %v364, %v368
      %v390 = vunpack.c.l.b16 %v337
      %v391 = vunpack.c.l.b16 %v338
      %v392 = vunpack.c.l.b16 %v339
      %v393 = vunpack.c.l.b16 %v340
      %v394 = vunpack.c.l.b16 %v341
      %v395 = vunpack.c.l.b16 %v342
      %v396 = vunpack.c.l.b16 %v343
      %v397 = vunpack.c.l.b16 %v344
      %v398 = vunpack.c.l.b16 %v345
      %v399 = vunpack.c.l.b16 %v346
      %v400 = vunpack.c.l.b16 %v347
      %v401 = vunpack.c.l.b16 %v348
      %v402 = vunpack.c.l.b16 %v349
      %v403 = vunpack.c.l.b16 %v350
      %v404 = vunpack.c.l.b16 %v351
      %v405 = vunpack.c.l.b16 %v352
      %v406 = vunpack.c.l.b16 %v353
      %v407 = vunpack.c.l.b16 %v354
      %v408 = vunpack.c.l.b16 %v355
      %v409 = vpack.c.b16 %v391, %v390
      %v410 = vpack.c.b16 %v393, %v392
      %v411 = vpack.c.b16 %v395, %v394
      %v412 = vpack.c.b16 %v397, %v396
      %v413 = vpack.c.b16 %v399, %v398
      %v414 = vpack.c.b16 %v401, %v400
      %v415 = vpack.c.b16 %v403, %v402
      %v416 = vpack.c.b16 %v405, %v404
      %v417 = vpack.c.b16 %v407, %v406
      %v418 = vpack.c.b16 %v408, %v408
      %v427 = vunpack.c.l.b16 %v356
      %v428 = vunpack.c.l.b16 %v357
      %v429 = vunpack.c.l.b16 %v358
      %v430 = vunpack.c.l.b16 %v359
      %v431 = vunpack.c.l.b16 %v360
      %v432 = vunpack.c.l.b16 %v361
      %v433 = vunpack.c.l.b16 %v362
      %v434 = vunpack.c.l.b16 %v363
      %v435 = vpack.c.b16 %v428, %v427
      %v436 = vpack.c.b16 %v430, %v429
      %v437 = vpack.c.b16 %v432, %v431
      %v438 = vpack.c.b16 %v434, %v433
      %vm443 = vcmask 523264
      %v445 = vsel %vm443, %v409, 0
      %v448 = vsel %vm443, %v410, 0
      %v451 = vsel %vm443, %v411, 0
      %v454 = vsel %vm443, %v412, 0
      %v457 = vsel %vm443, %v413, 0
      %v460 = vsel %vm443, %v414, 0
      %v463 = vsel %vm443, %v415, 0
      %v466 = vsel %vm443, %v416, 0
      %v469 = vsel %vm443, %v417, 0
      %v472 = vsel %vm443, %v418, 0
      %474 = vmatprep.subr.bf16.mxu0 0
      %475 = vmatpush1.bf16.msra.mxu0 %v435
      %476 = vmatprep.subr.bf16.mxu0 0
      %477 = vmatpush1.bf16.msra.mxu0 %v436
      %478 = vmatprep.subr.bf16.mxu0 0
      %479 = vmatpush1.bf16.msra.mxu0 %v437
      %480 = vmatprep.subr.bf16.mxu0 0
      %481 = vmatpush1.bf16.msra.mxu0 %v438
      %482 = vmatprep.subr.bf16.mxu0 0
      %483 = vmatpush1.bf16.msra.mxu0 0
      %484 = vmatprep.subr.bf16.mxu0 0
      %485 = vmatpush1.bf16.msra.mxu0 0
      %486 = vmatprep.subr.bf16.mxu0 0
      %487 = vmatpush1.bf16.msra.mxu0 0
      %488 = vmatprep.subr.bf16.mxu0 0
      %489 = vmatpush1.bf16.msra.mxu0 0
      %490 = vmatprep.subr.bf16.mxu0 0
      %491 = vmatpush1.bf16.msra.mxu0 0
      %492 = vmatprep.subr.bf16.mxu0 0
      %493 = vmatpush1.bf16.msra.mxu0 0
      %494 = vmatprep.subr.bf16.mxu0 0
      %495 = vmatpush1.bf16.msra.mxu0 0
      %496 = vmatprep.subr.bf16.mxu0 0
      %497 = vmatpush1.bf16.msra.mxu0 0
      %498 = vmatprep.subr.bf16.mxu0 0
      %499 = vmatpush1.bf16.msra.mxu0 0
      %500 = vmatprep.subr.bf16.mxu0 0
      %501 = vmatpush1.bf16.msra.mxu0 0
      %502 = vmatprep.subr.bf16.mxu0 0
      %503 = vmatpush1.bf16.msra.mxu0 0
      %504 = vmatprep.subr.bf16.mxu0 0
      %505 = vmatpush1.bf16.msra.mxu0 0
      %506 = vmatprep.mubr.bf16.mxu0 0
      %507 = vmatmul.mubr.bf16.gmra.mrb[0].mxu0 %v445
      %v508 = vpop.f32.mrb[0].mxu0
      %v509 = vadd.f32 %v369, %v508
      %v510 = vpop.f32.mrb[0].mxu0
      %v511 = vpop.f32.mrb[0].mxu0
      %v512 = vadd.f32 %v369, %v511
      %v513 = vpop.f32.mrb[0].mxu0
      %514 = vmatprep.mubr.bf16.mxu0 0
      %515 = vmatmul.mubr.bf16.gmra.mrb[0].mxu0 %v448
      %v516 = vpop.f32.mrb[0].mxu0
      %v517 = vadd.f32 %v369, %v516
      %v518 = vpop.f32.mrb[0].mxu0
      %v519 = vpop.f32.mrb[0].mxu0
      %v520 = vadd.f32 %v369, %v519
      %v521 = vpop.f32.mrb[0].mxu0
      %522 = vmatprep.mubr.bf16.mxu0 0
      %523 = vmatmul.mubr.bf16.gmra.mrb[0].mxu0 %v451
      %v524 = vpop.f32.mrb[0].mxu0
      %v525 = vadd.f32 %v369, %v524
      %v526 = vpop.f32.mrb[0].mxu0
      %v527 = vpop.f32.mrb[0].mxu0
      %v528 = vadd.f32 %v369, %v527
      %v529 = vpop.f32.mrb[0].mxu0
      %530 = vmatprep.mubr.bf16.mxu0 0
      %531 = vmatmul.mubr.bf16.gmra.mrb[0].mxu0 %v454
      %v532 = vpop.f32.mrb[0].mxu0
      %v533 = vadd.f32 %v369, %v532
      %v534 = vpop.f32.mrb[0].mxu0
      %v535 = vpop.f32.mrb[0].mxu0
      %v536 = vadd.f32 %v369, %v535
      %v537 = vpop.f32.mrb[0].mxu0
      %538 = vmatprep.mubr.bf16.mxu0 0
      %539 = vmatmul.mubr.bf16.gmra.mrb[0].mxu0 %v457
      %v540 = vpop.f32.mrb[0].mxu0
      %v541 = vadd.f32 %v369, %v540
      %v542 = vpop.f32.mrb[0].mxu0
      %v543 = vpop.f32.mrb[0].mxu0
      %v544 = vadd.f32 %v369, %v543
      %v545 = vpop.f32.mrb[0].mxu0
      %546 = vmatprep.mubr.bf16.mxu0 0
      %547 = vmatmul.mubr.bf16.gmra.mrb[0].mxu0 %v460
      %v548 = vpop.f32.mrb[0].mxu0
      %v549 = vadd.f32 %v369, %v548
      %v550 = vpop.f32.mrb[0].mxu0
      %v551 = vpop.f32.mrb[0].mxu0
      %v552 = vadd.f32 %v369, %v551
      %v553 = vpop.f32.mrb[0].mxu0
      %554 = vmatprep.mubr.bf16.mxu0 0
      %555 = vmatmul.mubr.bf16.gmra.mrb[0].mxu0 %v463
      %v556 = vpop.f32.mrb[0].mxu0
      %v557 = vadd.f32 %v369, %v556
      %v558 = vpop.f32.mrb[0].mxu0
      %v559 = vpop.f32.mrb[0].mxu0
      %v560 = vadd.f32 %v369, %v559
      %v561 = vpop.f32.mrb[0].mxu0
      %562 = vmatprep.mubr.bf16.mxu0 0
      %563 = vmatmul.mubr.bf16.gmra.mrb[0].mxu0 %v466
      %v564 = vpop.f32.mrb[0].mxu0
      %v565 = vadd.f32 %v369, %v564
      %v566 = vpop.f32.mrb[0].mxu0
      %v567 = vpop.f32.mrb[0].mxu0
      %v568 = vadd.f32 %v369, %v567
      %v569 = vpop.f32.mrb[0].mxu0
      %570 = vmatprep.mubr.bf16.mxu0 0
      %571 = vmatmul.mubr.bf16.gmra.mrb[0].mxu0 %v469
      %v572 = vpop.f32.mrb[0].mxu0
      %v573 = vadd.f32 %v369, %v572
      %v574 = vpop.f32.mrb[0].mxu0
      %v575 = vpop.f32.mrb[0].mxu0
      %v576 = vadd.f32 %v369, %v575
      %v577 = vpop.f32.mrb[0].mxu0
      %578 = vmatprep.mubr.bf16.mxu0 0
      %579 = vmatmul.mubr.bf16.gmra.mrb[0].mxu0 %v472
      %v580 = vpop.f32.mrb[0].mxu0
      %v581 = vadd.f32 %v369, %v580
      %v582 = vpop.f32.mrb[0].mxu0
      %v583 = vpop.f32.mrb[0].mxu0
      %v584 = vpop.f32.mrb[0].mxu0
      %585 = vdwg.mxu0
      %vm586 = vcmp.gt.f32.partialorder %v509, 0.0
      %vm587 = vcmp.gt.f32.partialorder %v512, 0.0
      %vm588 = vcmp.gt.f32.partialorder %v517, 0.0
      %vm589 = vcmp.gt.f32.partialorder %v520, 0.0
      %vm590 = vcmp.gt.f32.partialorder %v525, 0.0
      %vm591 = vcmp.gt.f32.partialorder %v528, 0.0
      %vm592 = vcmp.gt.f32.partialorder %v533, 0.0
      %vm593 = vcmp.gt.f32.partialorder %v536, 0.0
      %vm594 = vcmp.gt.f32.partialorder %v541, 0.0
      %vm595 = vcmp.gt.f32.partialorder %v544, 0.0
      %vm596 = vcmp.gt.f32.partialorder %v549, 0.0
      %vm597 = vcmp.gt.f32.partialorder %v552, 0.0
      %vm598 = vcmp.gt.f32.partialorder %v557, 0.0
      %vm599 = vcmp.gt.f32.partialorder %v560, 0.0
      %vm600 = vcmp.gt.f32.partialorder %v565, 0.0
      %vm601 = vcmp.gt.f32.partialorder %v568, 0.0
      %vm602 = vcmp.gt.f32.partialorder %v573, 0.0
      %vm603 = vcmp.gt.f32.partialorder %v576, 0.0
      %vm604 = vcmp.gt.f32.partialorder %v581, 0.0
      %v605 = vmul.f32 %v509, 0.02
      %v606 = vmul.f32 %v512, 0.02
      %v607 = vmul.f32 %v517, 0.02
      %v608 = vmul.f32 %v520, 0.02
      %v609 = vmul.f32 %v525, 0.02
      %v610 = vmul.f32 %v528, 0.02
      %v611 = vmul.f32 %v533, 0.02
      %v612 = vmul.f32 %v536, 0.02
      %v613 = vmul.f32 %v541, 0.02
      %v614 = vmul.f32 %v544, 0.02
      %v615 = vmul.f32 %v549, 0.02
      %v616 = vmul.f32 %v552, 0.02
      %v617 = vmul.f32 %v557, 0.02
      %v618 = vmul.f32 %v560, 0.02
      %v619 = vmul.f32 %v565, 0.02
      %v620 = vmul.f32 %v568, 0.02
      %v621 = vmul.f32 %v573, 0.02
      %v622 = vmul.f32 %v576, 0.02
      %v623 = vmul.f32 %v581, 0.02
      %v624 = vsel %vm586, %v509, %v605
      %v625 = vsel %vm587, %v512, %v606
      %v626 = vsel %vm588, %v517, %v607
      %v627 = vsel %vm589, %v520, %v608
      %v628 = vsel %vm590, %v525, %v609
      %v629 = vsel %vm591, %v528, %v610
      %v630 = vsel %vm592, %v533, %v611
      %v631 = vsel %vm593, %v536, %v612
      %v632 = vsel %vm594, %v541, %v613
      %v633 = vsel %vm595, %v544, %v614
      %v634 = vsel %vm596, %v549, %v615
      %v635 = vsel %vm597, %v552, %v616
      %v636 = vsel %vm598, %v557, %v617
      %v637 = vsel %vm599, %v560, %v618
      %v638 = vsel %vm600, %v565, %v619
      %v639 = vsel %vm601, %v568, %v620
      %v640 = vsel %vm602, %v573, %v621
      %v641 = vsel %vm603, %v576, %v622
      %v642 = vsel %vm604, %v581, %v623
      %v643 = vpack.c.bf16 %v625, %v624
      %v644 = vpack.c.bf16 %v627, %v626
      %v645 = vpack.c.bf16 %v629, %v628
      %v646 = vpack.c.bf16 %v631, %v630
      %v647 = vpack.c.bf16 %v633, %v632
      %v648 = vpack.c.bf16 %v635, %v634
      %v649 = vpack.c.bf16 %v637, %v636
      %v650 = vpack.c.bf16 %v639, %v638
      %v651 = vpack.c.bf16 %v641, %v640
      %v652 = vpack.c.bf16 %v642, %v642
      %v653 = vld [vmem:[%s3] sm:$0xf]
      %v654 = vld [vmem:[%s3 + $0x4] sm:$0xf]
      %v655 = vld [vmem:[%s3 + $0x8] sm:$0xf]
      %v656 = vld [vmem:[%s3 + $0xc] sm:$0xf]
      %v657 = vld [vmem:[%s3 + $0x10] sm:$0xf]
      %v658 = vld [vmem:[%s3 + $0x14] sm:$0xf]
      %v659 = vld [vmem:[%s3 + $0x18] sm:$0xf]
      %v660 = vld [vmem:[%s3 + $0x1c] sm:$0xf]
      %v661 = vld [vmem:[%s3 + $0x20] sm:$0xf]
      %v662 = vld [vmem:[%s3 + $0x24] sm:$0xf]
      %v663 = vld [vmem:[%s3 + $0x28] sm:$0xf]
      %v664 = vld [vmem:[%s3 + $0x2c] sm:$0xf]
      %v665 = vld [vmem:[%s3 + $0x30] sm:$0xf]
      %v666 = vld [vmem:[%s3 + $0x34] sm:$0xf]
      %v667 = vld [vmem:[%s3 + $0x38] sm:$0xf]
      %v668 = vld [vmem:[%s3 + $0x3c] sm:$0xf]
      %v669 = vld [vmem:[%s4] sm:$0x1]
      %v671 = vlaneseq
      %v672 = vshrl.u32 %v671, 7
      %v673 = vsub.s32 0, %v672
      %v674 = vrot.slane %v669, %v673
      %v692 = vunpack.c.l.b16 %v653
      %v693 = vunpack.c.l.b16 %v654
      %v694 = vunpack.c.l.b16 %v655
      %v695 = vunpack.c.l.b16 %v656
      %v696 = vunpack.c.l.b16 %v657
      %v697 = vunpack.c.l.b16 %v658
      %v698 = vunpack.c.l.b16 %v659
      %v699 = vunpack.c.l.b16 %v660
      %v700 = vunpack.c.l.b16 %v661
      %v701 = vunpack.c.l.b16 %v662
      %v702 = vunpack.c.l.b16 %v663
      %v703 = vunpack.c.l.b16 %v664
      %v704 = vunpack.c.l.b16 %v665
      %v705 = vunpack.c.l.b16 %v666
      %v706 = vunpack.c.l.b16 %v667
      %v707 = vunpack.c.l.b16 %v668
      %v708 = vpack.c.b16 %v693, %v692
      %v709 = vpack.c.b16 %v695, %v694
      %v710 = vpack.c.b16 %v697, %v696
      %v711 = vpack.c.b16 %v699, %v698
      %v712 = vpack.c.b16 %v701, %v700
      %v713 = vpack.c.b16 %v703, %v702
      %v714 = vpack.c.b16 %v705, %v704
      %v715 = vpack.c.b16 %v707, %v706
      %724 = vmatprep.subr.bf16.mxu0 0
      %725 = vmatpush1.bf16.msra.mxu0 %v708
      %726 = vmatprep.subr.bf16.mxu0 0
      %727 = vmatpush1.bf16.msra.mxu0 %v709
      %728 = vmatprep.subr.bf16.mxu0 0
      %729 = vmatpush1.bf16.msra.mxu0 %v710
      %730 = vmatprep.subr.bf16.mxu0 0
      %731 = vmatpush1.bf16.msra.mxu0 %v711
      %732 = vmatprep.subr.bf16.mxu0 0
      %733 = vmatpush1.bf16.msra.mxu0 %v712
      %734 = vmatprep.subr.bf16.mxu0 0
      %735 = vmatpush1.bf16.msra.mxu0 %v713
      %736 = vmatprep.subr.bf16.mxu0 0
      %737 = vmatpush1.bf16.msra.mxu0 %v714
      %738 = vmatprep.subr.bf16.mxu0 0
      %739 = vmatpush1.bf16.msra.mxu0 %v715
      %740 = vmatprep.subr.bf16.mxu0 0
      %741 = vmatpush1.bf16.msra.mxu0 0
      %742 = vmatprep.subr.bf16.mxu0 0
      %743 = vmatpush1.bf16.msra.mxu0 0
      %744 = vmatprep.subr.bf16.mxu0 0
      %745 = vmatpush1.bf16.msra.mxu0 0
      %746 = vmatprep.subr.bf16.mxu0 0
      %747 = vmatpush1.bf16.msra.mxu0 0
      %748 = vmatprep.subr.bf16.mxu0 0
      %749 = vmatpush1.bf16.msra.mxu0 0
      %750 = vmatprep.subr.bf16.mxu0 0
      %751 = vmatpush1.bf16.msra.mxu0 0
      %752 = vmatprep.subr.bf16.mxu0 0
      %753 = vmatpush1.bf16.msra.mxu0 0
      %754 = vmatprep.subr.bf16.mxu0 0
      %755 = vmatpush1.bf16.msra.mxu0 0
      %756 = vmatprep.mubr.bf16.mxu0 0
      %757 = vmatmul.mubr.bf16.gmra.mrb[0].mxu0 %v643
      %v758 = vpop.f32.mrb[0].mxu0
      %v759 = vadd.f32 %v674, %v758
      %v760 = vpop.f32.mrb[0].mxu0
      %v761 = vpop.f32.mrb[0].mxu0
      %v762 = vadd.f32 %v674, %v761
      %v763 = vpop.f32.mrb[0].mxu0
      %764 = vmatprep.mubr.bf16.mxu0 0
      %765 = vmatmul.mubr.bf16.gmra.mrb[0].mxu0 %v644
      %v766 = vpop.f32.mrb[0].mxu0
      %v767 = vadd.f32 %v674, %v766
      %v768 = vpop.f32.mrb[0].mxu0
      %v769 = vpop.f32.mrb[0].mxu0
      %v770 = vadd.f32 %v674, %v769
      %v771 = vpop.f32.mrb[0].mxu0
      %772 = vmatprep.mubr.bf16.mxu0 0
      %773 = vmatmul.mubr.bf16.gmra.mrb[0].mxu0 %v645
      %v774 = vpop.f32.mrb[0].mxu0
      %v775 = vadd.f32 %v674, %v774
      %v776 = vpop.f32.mrb[0].mxu0
      %v777 = vpop.f32.mrb[0].mxu0
      %v778 = vadd.f32 %v674, %v777
      %v779 = vpop.f32.mrb[0].mxu0
      %780 = vmatprep.mubr.bf16.mxu0 0
      %781 = vmatmul.mubr.bf16.gmra.mrb[0].mxu0 %v646
      %v782 = vpop.f32.mrb[0].mxu0
      %v783 = vadd.f32 %v674, %v782
      %v784 = vpop.f32.mrb[0].mxu0
      %v785 = vpop.f32.mrb[0].mxu0
      %v786 = vadd.f32 %v674, %v785
      %v787 = vpop.f32.mrb[0].mxu0
      %788 = vmatprep.mubr.bf16.mxu0 0
      %789 = vmatmul.mubr.bf16.gmra.mrb[0].mxu0 %v647
      %v790 = vpop.f32.mrb[0].mxu0
      %v791 = vadd.f32 %v674, %v790
      %v792 = vpop.f32.mrb[0].mxu0
      %v793 = vpop.f32.mrb[0].mxu0
      %v794 = vadd.f32 %v674, %v793
      %v795 = vpop.f32.mrb[0].mxu0
      %796 = vmatprep.mubr.bf16.mxu0 0
      %797 = vmatmul.mubr.bf16.gmra.mrb[0].mxu0 %v648
      %v798 = vpop.f32.mrb[0].mxu0
      %v799 = vadd.f32 %v674, %v798
      %v800 = vpop.f32.mrb[0].mxu0
      %v801 = vpop.f32.mrb[0].mxu0
      %v802 = vadd.f32 %v674, %v801
      %v803 = vpop.f32.mrb[0].mxu0
      %804 = vmatprep.mubr.bf16.mxu0 0
      %805 = vmatmul.mubr.bf16.gmra.mrb[0].mxu0 %v649
      %v806 = vpop.f32.mrb[0].mxu0
      %v807 = vadd.f32 %v674, %v806
      %v808 = vpop.f32.mrb[0].mxu0
      %v809 = vpop.f32.mrb[0].mxu0
      %v810 = vadd.f32 %v674, %v809
      %v811 = vpop.f32.mrb[0].mxu0
      %812 = vmatprep.mubr.bf16.mxu0 0
      %813 = vmatmul.mubr.bf16.gmra.mrb[0].mxu0 %v650
      %v814 = vpop.f32.mrb[0].mxu0
      %v815 = vadd.f32 %v674, %v814
      %v816 = vpop.f32.mrb[0].mxu0
      %v817 = vpop.f32.mrb[0].mxu0
      %v818 = vadd.f32 %v674, %v817
      %v819 = vpop.f32.mrb[0].mxu0
      %820 = vmatprep.mubr.bf16.mxu0 0
      %821 = vmatmul.mubr.bf16.gmra.mrb[0].mxu0 %v651
      %v822 = vpop.f32.mrb[0].mxu0
      %v823 = vadd.f32 %v674, %v822
      %v824 = vpop.f32.mrb[0].mxu0
      %v825 = vpop.f32.mrb[0].mxu0
      %v826 = vadd.f32 %v674, %v825
      %v827 = vpop.f32.mrb[0].mxu0
      %828 = vmatprep.mubr.bf16.mxu0 0
      %829 = vmatmul.mubr.bf16.gmra.mrb[0].mxu0 %v652
      %v830 = vpop.f32.mrb[0].mxu0
      %v831 = vadd.f32 %v674, %v830
      %v832 = vpop.f32.mrb[0].mxu0
      %v833 = vpop.f32.mrb[0].mxu0
      %v834 = vpop.f32.mrb[0].mxu0
      %835 = vdwg.mxu0
      %vm836 = vcmp.gt.f32.partialorder %v759, 0.0
      %vm837 = vcmp.gt.f32.partialorder %v762, 0.0
      %vm838 = vcmp.gt.f32.partialorder %v767, 0.0
      %vm839 = vcmp.gt.f32.partialorder %v770, 0.0
      %vm840 = vcmp.gt.f32.partialorder %v775, 0.0
      %vm841 = vcmp.gt.f32.partialorder %v778, 0.0
      %vm842 = vcmp.gt.f32.partialorder %v783, 0.0
      %vm843 = vcmp.gt.f32.partialorder %v786, 0.0
      %vm844 = vcmp.gt.f32.partialorder %v791, 0.0
      %vm845 = vcmp.gt.f32.partialorder %v794, 0.0
      %vm846 = vcmp.gt.f32.partialorder %v799, 0.0
      %vm847 = vcmp.gt.f32.partialorder %v802, 0.0
      %vm848 = vcmp.gt.f32.partialorder %v807, 0.0
      %vm849 = vcmp.gt.f32.partialorder %v810, 0.0
      %vm850 = vcmp.gt.f32.partialorder %v815, 0.0
      %vm851 = vcmp.gt.f32.partialorder %v818, 0.0
      %vm852 = vcmp.gt.f32.partialorder %v823, 0.0
      %vm853 = vcmp.gt.f32.partialorder %v826, 0.0
      %vm854 = vcmp.gt.f32.partialorder %v831, 0.0
      %v855 = vmul.f32 %v759, 0.02
      %v856 = vmul.f32 %v762, 0.02
      %v857 = vmul.f32 %v767, 0.02
      %v858 = vmul.f32 %v770, 0.02
      %v859 = vmul.f32 %v775, 0.02
      %v860 = vmul.f32 %v778, 0.02
      %v861 = vmul.f32 %v783, 0.02
      %v862 = vmul.f32 %v786, 0.02
      %v863 = vmul.f32 %v791, 0.02
      %v864 = vmul.f32 %v794, 0.02
      %v865 = vmul.f32 %v799, 0.02
      %v866 = vmul.f32 %v802, 0.02
      %v867 = vmul.f32 %v807, 0.02
      %v868 = vmul.f32 %v810, 0.02
      %v869 = vmul.f32 %v815, 0.02
      %v870 = vmul.f32 %v818, 0.02
      %v871 = vmul.f32 %v823, 0.02
      %v872 = vmul.f32 %v826, 0.02
      %v873 = vmul.f32 %v831, 0.02
      %v874 = vsel %vm836, %v759, %v855
      %v875 = vsel %vm837, %v762, %v856
      %v876 = vsel %vm838, %v767, %v857
      %v877 = vsel %vm839, %v770, %v858
      %v878 = vsel %vm840, %v775, %v859
      %v879 = vsel %vm841, %v778, %v860
      %v880 = vsel %vm842, %v783, %v861
      %v881 = vsel %vm843, %v786, %v862
      %v882 = vsel %vm844, %v791, %v863
      %v883 = vsel %vm845, %v794, %v864
      %v884 = vsel %vm846, %v799, %v865
      %v885 = vsel %vm847, %v802, %v866
      %v886 = vsel %vm848, %v807, %v867
      %v887 = vsel %vm849, %v810, %v868
      %v888 = vsel %vm850, %v815, %v869
      %v889 = vsel %vm851, %v818, %v870
      %v890 = vsel %vm852, %v823, %v871
      %v891 = vsel %vm853, %v826, %v872
      %v892 = vsel %vm854, %v831, %v873
      %v893 = vpack.c.bf16 %v875, %v874
      %v894 = vpack.c.bf16 %v877, %v876
      %v895 = vpack.c.bf16 %v879, %v878
      %v896 = vpack.c.bf16 %v881, %v880
      %v897 = vpack.c.bf16 %v883, %v882
      %v898 = vpack.c.bf16 %v885, %v884
      %v899 = vpack.c.bf16 %v887, %v886
      %v900 = vpack.c.bf16 %v889, %v888
      %v901 = vpack.c.bf16 %v891, %v890
      %v902 = vpack.c.bf16 %v892, %v892
      %v903 = vld [vmem:[%s5] sm:$0xf]
      %v904 = vld [vmem:[%s5 + $0x4] sm:$0xf]
      %v905 = vld [vmem:[%s5 + $0x8] sm:$0xf]
      %v906 = vld [vmem:[%s5 + $0xc] sm:$0xf]
      %v907 = vld [vmem:[%s5 + $0x10] sm:$0xf]
      %v908 = vld [vmem:[%s5 + $0x14] sm:$0xf]
      %v909 = vld [vmem:[%s5 + $0x18] sm:$0xf]
      %v910 = vld [vmem:[%s5 + $0x1c] sm:$0xf]
      %v911 = vld [vmem:[%s5 + $0x20] sm:$0xf]
      %v912 = vld [vmem:[%s5 + $0x24] sm:$0xf]
      %v913 = vld [vmem:[%s5 + $0x28] sm:$0xf]
      %v914 = vld [vmem:[%s5 + $0x2c] sm:$0xf]
      %v915 = vld [vmem:[%s5 + $0x30] sm:$0xf]
      %v916 = vld [vmem:[%s5 + $0x34] sm:$0xf]
      %v917 = vld [vmem:[%s5 + $0x38] sm:$0xf]
      %v918 = vld [vmem:[%s5 + $0x3c] sm:$0xf]
      %v919 = vld [vmem:[%s6] sm:$0x1]
      %v921 = vlaneseq
      %v922 = vshrl.u32 %v921, 7
      %v923 = vsub.s32 0, %v922
      %v924 = vrot.slane %v919, %v923
      %v942 = vunpack.c.l.b16 %v903
      %v943 = vunpack.c.l.b16 %v904
      %v944 = vunpack.c.l.b16 %v905
      %v945 = vunpack.c.l.b16 %v906
      %v946 = vunpack.c.l.b16 %v907
      %v947 = vunpack.c.l.b16 %v908
      %v948 = vunpack.c.l.b16 %v909
      %v949 = vunpack.c.l.b16 %v910
      %v950 = vunpack.c.l.b16 %v911
      %v951 = vunpack.c.l.b16 %v912
      %v952 = vunpack.c.l.b16 %v913
      %v953 = vunpack.c.l.b16 %v914
      %v954 = vunpack.c.l.b16 %v915
      %v955 = vunpack.c.l.b16 %v916
      %v956 = vunpack.c.l.b16 %v917
      %v957 = vunpack.c.l.b16 %v918
      %v958 = vpack.c.b16 %v943, %v942
      %v959 = vpack.c.b16 %v945, %v944
      %v960 = vpack.c.b16 %v947, %v946
      %v961 = vpack.c.b16 %v949, %v948
      %v962 = vpack.c.b16 %v951, %v950
      %v963 = vpack.c.b16 %v953, %v952
      %v964 = vpack.c.b16 %v955, %v954
      %v965 = vpack.c.b16 %v957, %v956
      %974 = vmatprep.subr.bf16.mxu0 0
      %975 = vmatpush1.bf16.msra.mxu0 %v958
      %976 = vmatprep.subr.bf16.mxu0 0
      %977 = vmatpush1.bf16.msra.mxu0 %v959
      %978 = vmatprep.subr.bf16.mxu0 0
      %979 = vmatpush1.bf16.msra.mxu0 %v960
      %980 = vmatprep.subr.bf16.mxu0 0
      %981 = vmatpush1.bf16.msra.mxu0 %v961
      %982 = vmatprep.subr.bf16.mxu0 0
      %983 = vmatpush1.bf16.msra.mxu0 %v962
      %984 = vmatprep.subr.bf16.mxu0 0
      %985 = vmatpush1.bf16.msra.mxu0 %v963
      %986 = vmatprep.subr.bf16.mxu0 0
      %987 = vmatpush1.bf16.msra.mxu0 %v964
      %988 = vmatprep.subr.bf16.mxu0 0
      %989 = vmatpush1.bf16.msra.mxu0 %v965
      %990 = vmatprep.subr.bf16.mxu0 0
      %991 = vmatpush1.bf16.msra.mxu0 0
      %992 = vmatprep.subr.bf16.mxu0 0
      %993 = vmatpush1.bf16.msra.mxu0 0
      %994 = vmatprep.subr.bf16.mxu0 0
      %995 = vmatpush1.bf16.msra.mxu0 0
      %996 = vmatprep.subr.bf16.mxu0 0
      %997 = vmatpush1.bf16.msra.mxu0 0
      %998 = vmatprep.subr.bf16.mxu0 0
      %999 = vmatpush1.bf16.msra.mxu0 0
      %1000 = vmatprep.subr.bf16.mxu0 0
      %1001 = vmatpush1.bf16.msra.mxu0 0
      %1002 = vmatprep.subr.bf16.mxu0 0
      %1003 = vmatpush1.bf16.msra.mxu0 0
      %1004 = vmatprep.subr.bf16.mxu0 0
      %1005 = vmatpush1.bf16.msra.mxu0 0
      %1006 = vmatprep.mubr.bf16.mxu0 0
      %1007 = vmatmul.mubr.bf16.gmra.mrb[0].mxu0 %v893
      %v1008 = vpop.f32.mrb[0].mxu0
      %v1009 = vadd.f32 %v924, %v1008
      %v1010 = vpop.f32.mrb[0].mxu0
      %v1011 = vpop.f32.mrb[0].mxu0
      %v1012 = vadd.f32 %v924, %v1011
      %v1013 = vpop.f32.mrb[0].mxu0
      %1014 = vmatprep.mubr.bf16.mxu0 0
      %1015 = vmatmul.mubr.bf16.gmra.mrb[0].mxu0 %v894
      %v1016 = vpop.f32.mrb[0].mxu0
      %v1017 = vadd.f32 %v924, %v1016
      %v1018 = vpop.f32.mrb[0].mxu0
      %v1019 = vpop.f32.mrb[0].mxu0
      %v1020 = vadd.f32 %v924, %v1019
      %v1021 = vpop.f32.mrb[0].mxu0
      %1022 = vmatprep.mubr.bf16.mxu0 0
      %1023 = vmatmul.mubr.bf16.gmra.mrb[0].mxu0 %v895
      %v1024 = vpop.f32.mrb[0].mxu0
      %v1025 = vadd.f32 %v924, %v1024
      %v1026 = vpop.f32.mrb[0].mxu0
      %v1027 = vpop.f32.mrb[0].mxu0
      %v1028 = vadd.f32 %v924, %v1027
      %v1029 = vpop.f32.mrb[0].mxu0
      %1030 = vmatprep.mubr.bf16.mxu0 0
      %1031 = vmatmul.mubr.bf16.gmra.mrb[0].mxu0 %v896
      %v1032 = vpop.f32.mrb[0].mxu0
      %v1033 = vadd.f32 %v924, %v1032
      %v1034 = vpop.f32.mrb[0].mxu0
      %v1035 = vpop.f32.mrb[0].mxu0
      %v1036 = vadd.f32 %v924, %v1035
      %v1037 = vpop.f32.mrb[0].mxu0
      %1038 = vmatprep.mubr.bf16.mxu0 0
      %1039 = vmatmul.mubr.bf16.gmra.mrb[0].mxu0 %v897
      %v1040 = vpop.f32.mrb[0].mxu0
      %v1041 = vadd.f32 %v924, %v1040
      %v1042 = vpop.f32.mrb[0].mxu0
      %v1043 = vpop.f32.mrb[0].mxu0
      %v1044 = vadd.f32 %v924, %v1043
      %v1045 = vpop.f32.mrb[0].mxu0
      %1046 = vmatprep.mubr.bf16.mxu0 0
      %1047 = vmatmul.mubr.bf16.gmra.mrb[0].mxu0 %v898
      %v1048 = vpop.f32.mrb[0].mxu0
      %v1049 = vadd.f32 %v924, %v1048
      %v1050 = vpop.f32.mrb[0].mxu0
      %v1051 = vpop.f32.mrb[0].mxu0
      %v1052 = vadd.f32 %v924, %v1051
      %v1053 = vpop.f32.mrb[0].mxu0
      %1054 = vmatprep.mubr.bf16.mxu0 0
      %1055 = vmatmul.mubr.bf16.gmra.mrb[0].mxu0 %v899
      %v1056 = vpop.f32.mrb[0].mxu0
      %v1057 = vadd.f32 %v924, %v1056
      %v1058 = vpop.f32.mrb[0].mxu0
      %v1059 = vpop.f32.mrb[0].mxu0
      %v1060 = vadd.f32 %v924, %v1059
      %v1061 = vpop.f32.mrb[0].mxu0
      %1062 = vmatprep.mubr.bf16.mxu0 0
      %1063 = vmatmul.mubr.bf16.gmra.mrb[0].mxu0 %v900
      %v1064 = vpop.f32.mrb[0].mxu0
      %v1065 = vadd.f32 %v924, %v1064
      %v1066 = vpop.f32.mrb[0].mxu0
      %v1067 = vpop.f32.mrb[0].mxu0
      %v1068 = vadd.f32 %v924, %v1067
      %v1069 = vpop.f32.mrb[0].mxu0
      %1070 = vmatprep.mubr.bf16.mxu0 0
      %1071 = vmatmul.mubr.bf16.gmra.mrb[0].mxu0 %v901
      %v1072 = vpop.f32.mrb[0].mxu0
      %v1073 = vadd.f32 %v924, %v1072
      %v1074 = vpop.f32.mrb[0].mxu0
      %v1075 = vpop.f32.mrb[0].mxu0
      %v1076 = vadd.f32 %v924, %v1075
      %v1077 = vpop.f32.mrb[0].mxu0
      %1078 = vmatprep.mubr.bf16.mxu0 0
      %1079 = vmatmul.mubr.bf16.gmra.mrb[0].mxu0 %v902
      %v1080 = vpop.f32.mrb[0].mxu0
      %v1081 = vadd.f32 %v924, %v1080
      %v1082 = vpop.f32.mrb[0].mxu0
      %v1083 = vpop.f32.mrb[0].mxu0
      %v1084 = vpop.f32.mrb[0].mxu0
      %1085 = vdwg.mxu0
      %vm1086 = vcmp.gt.f32.partialorder %v1009, 0.0
      %vm1087 = vcmp.gt.f32.partialorder %v1012, 0.0
      %vm1088 = vcmp.gt.f32.partialorder %v1017, 0.0
      %vm1089 = vcmp.gt.f32.partialorder %v1020, 0.0
      %vm1090 = vcmp.gt.f32.partialorder %v1025, 0.0
      %vm1091 = vcmp.gt.f32.partialorder %v1028, 0.0
      %vm1092 = vcmp.gt.f32.partialorder %v1033, 0.0
      %vm1093 = vcmp.gt.f32.partialorder %v1036, 0.0
      %vm1094 = vcmp.gt.f32.partialorder %v1041, 0.0
      %vm1095 = vcmp.gt.f32.partialorder %v1044, 0.0
      %vm1096 = vcmp.gt.f32.partialorder %v1049, 0.0
      %vm1097 = vcmp.gt.f32.partialorder %v1052, 0.0
      %vm1098 = vcmp.gt.f32.partialorder %v1057, 0.0
      %vm1099 = vcmp.gt.f32.partialorder %v1060, 0.0
      %vm1100 = vcmp.gt.f32.partialorder %v1065, 0.0
      %vm1101 = vcmp.gt.f32.partialorder %v1068, 0.0
      %vm1102 = vcmp.gt.f32.partialorder %v1073, 0.0
      %vm1103 = vcmp.gt.f32.partialorder %v1076, 0.0
      %vm1104 = vcmp.gt.f32.partialorder %v1081, 0.0
      %v1105 = vmul.f32 %v1009, 0.02
      %v1106 = vmul.f32 %v1012, 0.02
      %v1107 = vmul.f32 %v1017, 0.02
      %v1108 = vmul.f32 %v1020, 0.02
      %v1109 = vmul.f32 %v1025, 0.02
      %v1110 = vmul.f32 %v1028, 0.02
      %v1111 = vmul.f32 %v1033, 0.02
      %v1112 = vmul.f32 %v1036, 0.02
      %v1113 = vmul.f32 %v1041, 0.02
      %v1114 = vmul.f32 %v1044, 0.02
      %v1115 = vmul.f32 %v1049, 0.02
      %v1116 = vmul.f32 %v1052, 0.02
      %v1117 = vmul.f32 %v1057, 0.02
      %v1118 = vmul.f32 %v1060, 0.02
      %v1119 = vmul.f32 %v1065, 0.02
      %v1120 = vmul.f32 %v1068, 0.02
      %v1121 = vmul.f32 %v1073, 0.02
      %v1122 = vmul.f32 %v1076, 0.02
      %v1123 = vmul.f32 %v1081, 0.02
      %v1124 = vsel %vm1086, %v1009, %v1105
      %v1125 = vsel %vm1087, %v1012, %v1106
      %v1126 = vsel %vm1088, %v1017, %v1107
      %v1127 = vsel %vm1089, %v1020, %v1108
      %v1128 = vsel %vm1090, %v1025, %v1109
      %v1129 = vsel %vm1091, %v1028, %v1110
      %v1130 = vsel %vm1092, %v1033, %v1111
      %v1131 = vsel %vm1093, %v1036, %v1112
      %v1132 = vsel %vm1094, %v1041, %v1113
      %v1133 = vsel %vm1095, %v1044, %v1114
      %v1134 = vsel %vm1096, %v1049, %v1115
      %v1135 = vsel %vm1097, %v1052, %v1116
      %v1136 = vsel %vm1098, %v1057, %v1117
      %v1137 = vsel %vm1099, %v1060, %v1118
      %v1138 = vsel %vm1100, %v1065, %v1119
      %v1139 = vsel %vm1101, %v1068, %v1120
      %v1140 = vsel %vm1102, %v1073, %v1121
      %v1141 = vsel %vm1103, %v1076, %v1122
      %v1142 = vsel %vm1104, %v1081, %v1123
      %v1143 = vpack.c.bf16 %v1125, %v1124
      %v1144 = vpack.c.bf16 %v1127, %v1126
      %v1145 = vpack.c.bf16 %v1129, %v1128
      %v1146 = vpack.c.bf16 %v1131, %v1130
      %v1147 = vpack.c.bf16 %v1133, %v1132
      %v1148 = vpack.c.bf16 %v1135, %v1134
      %v1149 = vpack.c.bf16 %v1137, %v1136
      %v1150 = vpack.c.bf16 %v1139, %v1138
      %v1151 = vpack.c.bf16 %v1141, %v1140
      %v1152 = vpack.c.bf16 %v1142, %v1142
      %v1153 = vld [vmem:[%s7] sm:$0xf]
      %v1154 = vld [vmem:[%s7 + $0x4] sm:$0xf]
      %v1155 = vld [vmem:[%s7 + $0x8] sm:$0xf]
      %v1156 = vld [vmem:[%s7 + $0xc] sm:$0xf]
      %v1157 = vld [vmem:[%s7 + $0x10] sm:$0xf]
      %v1158 = vld [vmem:[%s7 + $0x14] sm:$0xf]
      %v1159 = vld [vmem:[%s7 + $0x18] sm:$0xf]
      %v1160 = vld [vmem:[%s7 + $0x1c] sm:$0xf]
      %v1161 = vld [vmem:[%s7 + $0x20] sm:$0xf]
      %v1162 = vld [vmem:[%s7 + $0x24] sm:$0xf]
      %v1163 = vld [vmem:[%s7 + $0x28] sm:$0xf]
      %v1164 = vld [vmem:[%s7 + $0x2c] sm:$0xf]
      %v1165 = vld [vmem:[%s7 + $0x30] sm:$0xf]
      %v1166 = vld [vmem:[%s7 + $0x34] sm:$0xf]
      %v1167 = vld [vmem:[%s7 + $0x38] sm:$0xf]
      %v1168 = vld [vmem:[%s7 + $0x3c] sm:$0xf]
      %v1169 = vld [vmem:[%s8] sm:$0x1]
      %v1171 = vlaneseq
      %v1172 = vshrl.u32 %v1171, 7
      %v1173 = vsub.s32 0, %v1172
      %v1174 = vrot.slane %v1169, %v1173
      %v1192 = vunpack.c.l.b16 %v1153
      %v1193 = vunpack.c.l.b16 %v1154
      %v1194 = vunpack.c.l.b16 %v1155
      %v1195 = vunpack.c.l.b16 %v1156
      %v1196 = vunpack.c.l.b16 %v1157
      %v1197 = vunpack.c.l.b16 %v1158
      %v1198 = vunpack.c.l.b16 %v1159
      %v1199 = vunpack.c.l.b16 %v1160
      %v1200 = vunpack.c.l.b16 %v1161
      %v1201 = vunpack.c.l.b16 %v1162
      %v1202 = vunpack.c.l.b16 %v1163
      %v1203 = vunpack.c.l.b16 %v1164
      %v1204 = vunpack.c.l.b16 %v1165
      %v1205 = vunpack.c.l.b16 %v1166
      %v1206 = vunpack.c.l.b16 %v1167
      %v1207 = vunpack.c.l.b16 %v1168
      %v1208 = vpack.c.b16 %v1193, %v1192
      %v1209 = vpack.c.b16 %v1195, %v1194
      %v1210 = vpack.c.b16 %v1197, %v1196
      %v1211 = vpack.c.b16 %v1199, %v1198
      %v1212 = vpack.c.b16 %v1201, %v1200
      %v1213 = vpack.c.b16 %v1203, %v1202
      %v1214 = vpack.c.b16 %v1205, %v1204
      %v1215 = vpack.c.b16 %v1207, %v1206
      %1224 = vmatprep.subr.bf16.mxu0 0
      %1225 = vmatpush1.bf16.msra.mxu0 %v1208
      %1226 = vmatprep.subr.bf16.mxu0 0
      %1227 = vmatpush1.bf16.msra.mxu0 %v1209
      %1228 = vmatprep.subr.bf16.mxu0 0
      %1229 = vmatpush1.bf16.msra.mxu0 %v1210
      %1230 = vmatprep.subr.bf16.mxu0 0
      %1231 = vmatpush1.bf16.msra.mxu0 %v1211
      %1232 = vmatprep.subr.bf16.mxu0 0
      %1233 = vmatpush1.bf16.msra.mxu0 %v1212
      %1234 = vmatprep.subr.bf16.mxu0 0
      %1235 = vmatpush1.bf16.msra.mxu0 %v1213
      %1236 = vmatprep.subr.bf16.mxu0 0
      %1237 = vmatpush1.bf16.msra.mxu0 %v1214
      %1238 = vmatprep.subr.bf16.mxu0 0
      %1239 = vmatpush1.bf16.msra.mxu0 %v1215
      %1240 = vmatprep.subr.bf16.mxu0 0
      %1241 = vmatpush1.bf16.msra.mxu0 0
      %1242 = vmatprep.subr.bf16.mxu0 0
      %1243 = vmatpush1.bf16.msra.mxu0 0
      %1244 = vmatprep.subr.bf16.mxu0 0
      %1245 = vmatpush1.bf16.msra.mxu0 0
      %1246 = vmatprep.subr.bf16.mxu0 0
      %1247 = vmatpush1.bf16.msra.mxu0 0
      %1248 = vmatprep.subr.bf16.mxu0 0
      %1249 = vmatpush1.bf16.msra.mxu0 0
      %1250 = vmatprep.subr.bf16.mxu0 0
      %1251 = vmatpush1.bf16.msra.mxu0 0
      %1252 = vmatprep.subr.bf16.mxu0 0
      %1253 = vmatpush1.bf16.msra.mxu0 0
      %1254 = vmatprep.subr.bf16.mxu0 0
      %1255 = vmatpush1.bf16.msra.mxu0 0
      %1256 = vmatprep.mubr.bf16.mxu0 0
      %1257 = vmatmul.mubr.bf16.gmra.mrb[0].mxu0 %v1143
      %v1258 = vpop.f32.mrb[0].mxu0
      %v1259 = vadd.f32 %v1174, %v1258
      %v1260 = vpop.f32.mrb[0].mxu0
      %v1261 = vpop.f32.mrb[0].mxu0
      %v1262 = vadd.f32 %v1174, %v1261
      %v1263 = vpop.f32.mrb[0].mxu0
      %1264 = vmatprep.mubr.bf16.mxu0 0
      %1265 = vmatmul.mubr.bf16.gmra.mrb[0].mxu0 %v1144
      %v1266 = vpop.f32.mrb[0].mxu0
      %v1267 = vadd.f32 %v1174, %v1266
      %v1268 = vpop.f32.mrb[0].mxu0
      %v1269 = vpop.f32.mrb[0].mxu0
      %v1270 = vadd.f32 %v1174, %v1269
      %v1271 = vpop.f32.mrb[0].mxu0
      %1272 = vmatprep.mubr.bf16.mxu0 0
      %1273 = vmatmul.mubr.bf16.gmra.mrb[0].mxu0 %v1145
      %v1274 = vpop.f32.mrb[0].mxu0
      %v1275 = vadd.f32 %v1174, %v1274
      %v1276 = vpop.f32.mrb[0].mxu0
      %v1277 = vpop.f32.mrb[0].mxu0
      %v1278 = vadd.f32 %v1174, %v1277
      %v1279 = vpop.f32.mrb[0].mxu0
      %1280 = vmatprep.mubr.bf16.mxu0 0
      %1281 = vmatmul.mubr.bf16.gmra.mrb[0].mxu0 %v1146
      %v1282 = vpop.f32.mrb[0].mxu0
      %v1283 = vadd.f32 %v1174, %v1282
      %v1284 = vpop.f32.mrb[0].mxu0
      %v1285 = vpop.f32.mrb[0].mxu0
      %v1286 = vadd.f32 %v1174, %v1285
      %v1287 = vpop.f32.mrb[0].mxu0
      %1288 = vmatprep.mubr.bf16.mxu0 0
      %1289 = vmatmul.mubr.bf16.gmra.mrb[0].mxu0 %v1147
      %v1290 = vpop.f32.mrb[0].mxu0
      %v1291 = vadd.f32 %v1174, %v1290
      %v1292 = vpop.f32.mrb[0].mxu0
      %v1293 = vpop.f32.mrb[0].mxu0
      %v1294 = vadd.f32 %v1174, %v1293
      %v1295 = vpop.f32.mrb[0].mxu0
      %1296 = vmatprep.mubr.bf16.mxu0 0
      %1297 = vmatmul.mubr.bf16.gmra.mrb[0].mxu0 %v1148
      %v1298 = vpop.f32.mrb[0].mxu0
      %v1299 = vadd.f32 %v1174, %v1298
      %v1300 = vpop.f32.mrb[0].mxu0
      %v1301 = vpop.f32.mrb[0].mxu0
      %v1302 = vadd.f32 %v1174, %v1301
      %v1303 = vpop.f32.mrb[0].mxu0
      %1304 = vmatprep.mubr.bf16.mxu0 0
      %1305 = vmatmul.mubr.bf16.gmra.mrb[0].mxu0 %v1149
      %v1306 = vpop.f32.mrb[0].mxu0
      %v1307 = vadd.f32 %v1174, %v1306
      %v1308 = vpop.f32.mrb[0].mxu0
      %v1309 = vpop.f32.mrb[0].mxu0
      %v1310 = vadd.f32 %v1174, %v1309
      %v1311 = vpop.f32.mrb[0].mxu0
      %1312 = vmatprep.mubr.bf16.mxu0 0
      %1313 = vmatmul.mubr.bf16.gmra.mrb[0].mxu0 %v1150
      %v1314 = vpop.f32.mrb[0].mxu0
      %v1315 = vadd.f32 %v1174, %v1314
      %v1316 = vpop.f32.mrb[0].mxu0
      %v1317 = vpop.f32.mrb[0].mxu0
      %v1318 = vadd.f32 %v1174, %v1317
      %v1319 = vpop.f32.mrb[0].mxu0
      %1320 = vmatprep.mubr.bf16.mxu0 0
      %1321 = vmatmul.mubr.bf16.gmra.mrb[0].mxu0 %v1151
      %v1322 = vpop.f32.mrb[0].mxu0
      %v1323 = vadd.f32 %v1174, %v1322
      %v1324 = vpop.f32.mrb[0].mxu0
      %v1325 = vpop.f32.mrb[0].mxu0
      %v1326 = vadd.f32 %v1174, %v1325
      %v1327 = vpop.f32.mrb[0].mxu0
      %1328 = vmatprep.mubr.bf16.mxu0 0
      %1329 = vmatmul.mubr.bf16.gmra.mrb[0].mxu0 %v1152
      %v1330 = vpop.f32.mrb[0].mxu0
      %v1331 = vadd.f32 %v1174, %v1330
      %v1332 = vpop.f32.mrb[0].mxu0
      %v1333 = vpop.f32.mrb[0].mxu0
      %v1334 = vpop.f32.mrb[0].mxu0
      %1335 = vdwg.mxu0
      %1336 = vmax.xlane.f32.xlu0 %v1259
      %v1337 = vpop.xlane.xlu0 %1336
      %1338 = vmax.xlane.f32.xlu0 %v1262
      %v1339 = vpop.xlane.xlu0 %1338
      %1340 = vmax.xlane.f32.xlu0 %v1267
      %v1341 = vpop.xlane.xlu0 %1340
      %1342 = vmax.xlane.f32.xlu0 %v1270
      %v1343 = vpop.xlane.xlu0 %1342
      %1344 = vmax.xlane.f32.xlu0 %v1275
      %v1345 = vpop.xlane.xlu0 %1344
      %1346 = vmax.xlane.f32.xlu0 %v1278
      %v1347 = vpop.xlane.xlu0 %1346
      %1348 = vmax.xlane.f32.xlu0 %v1283
      %v1349 = vpop.xlane.xlu0 %1348
      %1350 = vmax.xlane.f32.xlu0 %v1286
      %v1351 = vpop.xlane.xlu0 %1350
      %1352 = vmax.xlane.f32.xlu0 %v1291
      %v1353 = vpop.xlane.xlu0 %1352
      %1354 = vmax.xlane.f32.xlu0 %v1294
      %v1355 = vpop.xlane.xlu0 %1354
      %1356 = vmax.xlane.f32.xlu0 %v1299
      %v1357 = vpop.xlane.xlu0 %1356
      %1358 = vmax.xlane.f32.xlu0 %v1302
      %v1359 = vpop.xlane.xlu0 %1358
      %1360 = vmax.xlane.f32.xlu0 %v1307
      %v1361 = vpop.xlane.xlu0 %1360
      %1362 = vmax.xlane.f32.xlu0 %v1310
      %v1363 = vpop.xlane.xlu0 %1362
      %1364 = vmax.xlane.f32.xlu0 %v1315
      %v1365 = vpop.xlane.xlu0 %1364
      %1366 = vmax.xlane.f32.xlu0 %v1318
      %v1367 = vpop.xlane.xlu0 %1366
      %1368 = vmax.xlane.f32.xlu0 %v1323
      %v1369 = vpop.xlane.xlu0 %1368
      %1370 = vmax.xlane.f32.xlu0 %v1326
      %v1371 = vpop.xlane.xlu0 %1370
      %1372 = vmax.xlane.f32.xlu0 %v1331
      %v1373 = vpop.xlane.xlu0 %1372
      %v1374 = vsub.f32 %v1259, %v1337
      %v1375 = vsub.f32 %v1262, %v1339
      %v1376 = vsub.f32 %v1267, %v1341
      %v1377 = vsub.f32 %v1270, %v1343
      %v1378 = vsub.f32 %v1275, %v1345
      %v1379 = vsub.f32 %v1278, %v1347
      %v1380 = vsub.f32 %v1283, %v1349
      %v1381 = vsub.f32 %v1286, %v1351
      %v1382 = vsub.f32 %v1291, %v1353
      %v1383 = vsub.f32 %v1294, %v1355
      %v1384 = vsub.f32 %v1299, %v1357
      %v1385 = vsub.f32 %v1302, %v1359
      %v1386 = vsub.f32 %v1307, %v1361
      %v1387 = vsub.f32 %v1310, %v1363
      %v1388 = vsub.f32 %v1315, %v1365
      %v1389 = vsub.f32 %v1318, %v1367
      %v1390 = vsub.f32 %v1323, %v1369
      %v1391 = vsub.f32 %v1326, %v1371
      %v1392 = vsub.f32 %v1331, %v1373
      %v1393 = vmul.f32 %v1374, 1.442695
      %v1394 = vpow.pop %v1393
      %v1395 = vmul.f32 %v1375, 1.442695
      %v1396 = vpow.pop %v1395
      %v1397 = vmul.f32 %v1376, 1.442695
      %v1398 = vpow.pop %v1397
      %v1399 = vmul.f32 %v1377, 1.442695
      %v1400 = vpow.pop %v1399
      %v1401 = vmul.f32 %v1378, 1.442695
      %v1402 = vpow.pop %v1401
      %v1403 = vmul.f32 %v1379, 1.442695
      %v1404 = vpow.pop %v1403
      %v1405 = vmul.f32 %v1380, 1.442695
      %v1406 = vpow.pop %v1405
      %v1407 = vmul.f32 %v1381, 1.442695
      %v1408 = vpow.pop %v1407
      %v1409 = vmul.f32 %v1382, 1.442695
      %v1410 = vpow.pop %v1409
      %v1411 = vmul.f32 %v1383, 1.442695
      %v1412 = vpow.pop %v1411
      %v1413 = vmul.f32 %v1384, 1.442695
      %v1414 = vpow.pop %v1413
      %v1415 = vmul.f32 %v1385, 1.442695
      %v1416 = vpow.pop %v1415
      %v1417 = vmul.f32 %v1386, 1.442695
      %v1418 = vpow.pop %v1417
      %v1419 = vmul.f32 %v1387, 1.442695
      %v1420 = vpow.pop %v1419
      %v1421 = vmul.f32 %v1388, 1.442695
      %v1422 = vpow.pop %v1421
      %v1423 = vmul.f32 %v1389, 1.442695
      %v1424 = vpow.pop %v1423
      %v1425 = vmul.f32 %v1390, 1.442695
      %v1426 = vpow.pop %v1425
      %v1427 = vmul.f32 %v1391, 1.442695
      %v1428 = vpow.pop %v1427
      %v1429 = vmul.f32 %v1392, 1.442695
      %v1430 = vpow.pop %v1429
      %1431 = vadd.xlane.f32.xlu0 %v1394
      %v1432 = vpop.xlane.xlu0 %1431
      %1433 = vadd.xlane.f32.xlu0 %v1396
      %v1434 = vpop.xlane.xlu0 %1433
      %1435 = vadd.xlane.f32.xlu0 %v1398
      %v1436 = vpop.xlane.xlu0 %1435
      %1437 = vadd.xlane.f32.xlu0 %v1400
      %v1438 = vpop.xlane.xlu0 %1437
      %1439 = vadd.xlane.f32.xlu0 %v1402
      %v1440 = vpop.xlane.xlu0 %1439
      %1441 = vadd.xlane.f32.xlu0 %v1404
      %v1442 = vpop.xlane.xlu0 %1441
      %1443 = vadd.xlane.f32.xlu0 %v1406
      %v1444 = vpop.xlane.xlu0 %1443
      %1445 = vadd.xlane.f32.xlu0 %v1408
      %v1446 = vpop.xlane.xlu0 %1445
      %1447 = vadd.xlane.f32.xlu0 %v1410
      %v1448 = vpop.xlane.xlu0 %1447
      %1449 = vadd.xlane.f32.xlu0 %v1412
      %v1450 = vpop.xlane.xlu0 %1449
      %1451 = vadd.xlane.f32.xlu0 %v1414
      %v1452 = vpop.xlane.xlu0 %1451
      %1453 = vadd.xlane.f32.xlu0 %v1416
      %v1454 = vpop.xlane.xlu0 %1453
      %1455 = vadd.xlane.f32.xlu0 %v1418
      %v1456 = vpop.xlane.xlu0 %1455
      %1457 = vadd.xlane.f32.xlu0 %v1420
      %v1458 = vpop.xlane.xlu0 %1457
      %1459 = vadd.xlane.f32.xlu0 %v1422
      %v1460 = vpop.xlane.xlu0 %1459
      %1461 = vadd.xlane.f32.xlu0 %v1424
      %v1462 = vpop.xlane.xlu0 %1461
      %1463 = vadd.xlane.f32.xlu0 %v1426
      %v1464 = vpop.xlane.xlu0 %1463
      %1465 = vadd.xlane.f32.xlu0 %v1428
      %v1466 = vpop.xlane.xlu0 %1465
      %1467 = vadd.xlane.f32.xlu0 %v1430
      %v1468 = vpop.xlane.xlu0 %1467
      %v1469 = vrcp.pop %v1432
      %v1470 = vmul.f32 %v1394, %v1469
      %v1471 = vrcp.pop %v1434
      %v1472 = vmul.f32 %v1396, %v1471
      %v1473 = vrcp.pop %v1436
      %v1474 = vmul.f32 %v1398, %v1473
      %v1475 = vrcp.pop %v1438
      %v1476 = vmul.f32 %v1400, %v1475
      %v1477 = vrcp.pop %v1440
      %v1478 = vmul.f32 %v1402, %v1477
      %v1479 = vrcp.pop %v1442
      %v1480 = vmul.f32 %v1404, %v1479
      %v1481 = vrcp.pop %v1444
      %v1482 = vmul.f32 %v1406, %v1481
      %v1483 = vrcp.pop %v1446
      %v1484 = vmul.f32 %v1408, %v1483
      %v1485 = vrcp.pop %v1448
      %v1486 = vmul.f32 %v1410, %v1485
      %v1487 = vrcp.pop %v1450
      %v1488 = vmul.f32 %v1412, %v1487
      %v1489 = vrcp.pop %v1452
      %v1490 = vmul.f32 %v1414, %v1489
      %v1491 = vrcp.pop %v1454
      %v1492 = vmul.f32 %v1416, %v1491
      %v1493 = vrcp.pop %v1456
      %v1494 = vmul.f32 %v1418, %v1493
      %v1495 = vrcp.pop %v1458
      %v1496 = vmul.f32 %v1420, %v1495
      %v1497 = vrcp.pop %v1460
      %v1498 = vmul.f32 %v1422, %v1497
      %v1499 = vrcp.pop %v1462
      %v1500 = vmul.f32 %v1424, %v1499
      %v1501 = vrcp.pop %v1464
      %v1502 = vmul.f32 %v1426, %v1501
      %v1503 = vrcp.pop %v1466
      %v1504 = vmul.f32 %v1428, %v1503
      %v1505 = vrcp.pop %v1468
      %v1506 = vmul.f32 %v1430, %v1505
      %vm1507 = vcmask 130048
      %1508 = vst.msk [vmem:[%s334] sm:$0xff] %vm1507, %v1470
      %1509 = vst.msk [vmem:[%s334 + $0x8] sm:$0xff] %vm1507, %v1472
      %1510 = vst.msk [vmem:[%s334 + $0x10] sm:$0xff] %vm1507, %v1474
      %1511 = vst.msk [vmem:[%s334 + $0x18] sm:$0xff] %vm1507, %v1476
      %1512 = vst.msk [vmem:[%s334 + $0x20] sm:$0xff] %vm1507, %v1478
      %1513 = vst.msk [vmem:[%s334 + $0x28] sm:$0xff] %vm1507, %v1480
      %1514 = vst.msk [vmem:[%s334 + $0x30] sm:$0xff] %vm1507, %v1482
      %1515 = vst.msk [vmem:[%s334 + $0x38] sm:$0xff] %vm1507, %v1484
      %1516 = vst.msk [vmem:[%s334 + $0x40] sm:$0xff] %vm1507, %v1486
      %1517 = vst.msk [vmem:[%s334 + $0x48] sm:$0xff] %vm1507, %v1488
      %1518 = vst.msk [vmem:[%s334 + $0x50] sm:$0xff] %vm1507, %v1490
      %1519 = vst.msk [vmem:[%s334 + $0x58] sm:$0xff] %vm1507, %v1492
      %1520 = vst.msk [vmem:[%s334 + $0x60] sm:$0xff] %vm1507, %v1494
      %1521 = vst.msk [vmem:[%s334 + $0x68] sm:$0xff] %vm1507, %v1496
      %1522 = vst.msk [vmem:[%s334 + $0x70] sm:$0xff] %vm1507, %v1498
      %1523 = vst.msk [vmem:[%s334 + $0x78] sm:$0xff] %vm1507, %v1500
      %1524 = vst.msk [vmem:[%s334 + $0x80] sm:$0xff] %vm1507, %v1502
      %1525 = vst.msk [vmem:[%s334 + $0x88] sm:$0xff] %vm1507, %v1504
      %1526 = vst.msk [vmem:[%s334 + $0x90] sm:$0xff] %vm1507, %v1506
      %s1527 = smul.u32 19, %s20
      %p1528 = scmp.lt.s32.totalorder %s1527, 37
      %s1529 = scalar_select %p1528, %s1527, 37
      %s1530 = smul.addr %s1529, 8
      %s1531 = scalar_lea.vmem %s9, %s1530
      // Predicated region
      $region57: #{tpu_custom_call.1} parent=55 // pred_check
        %p1532 = pneg %p232
      $region58: #{tpu_custom_call.1} parent=55 // pred_check_branch
        %1534 = sbr.rel (%p1532) target = $region60
      $region59: #{tpu_custom_call.1} parent=55 // pred_region
        %s1535 = smul.u32 19, %s20
      $region60: #{tpu_custom_call.1} parent=55 // pred_fallthru
        _
    $region56: #{tpu_custom_call.1} parent=5 // pred_fallthru
      _
    %p1536 = scmp.le.s32.totalorder 2, %s15
    // Predicated region
    $region61: #{tpu_custom_call.1} parent=5 // pred_check
      %p1537 = pneg %p1536
    $region62: #{tpu_custom_call.1} parent=5 // pred_check_branch
      %1539 = sbr.rel (%p1537) target = $region64
    $region63: #{tpu_custom_call.1} parent=5 // pred_region
      %s1540 = ssub.s32 %s15, 2
      // Predicated region
      $region65: #{tpu_custom_call.1} parent=63 // pred_check
        %p1541 = pneg %p238
      $region66: #{tpu_custom_call.1} parent=63 // pred_check_branch
        %1543 = sbr.rel (%p1541) target = $region68
      $region67: #{tpu_custom_call.1} parent=63 // pred_region
        %s1544 = smul.u32 19, %s21
        %p1545 = scmp.lt.s32.totalorder %s1544, 37
        %s1546 = scalar_select %p1545, %s1544, 37
        %s1547 = smul.addr %s1546, 8
        %s1548 = scalar_lea.vmem %s9, %s1547
      $region68: #{tpu_custom_call.1} parent=63 // pred_fallthru
        _
    $region64: #{tpu_custom_call.1} parent=5 // pred_fallthru
      _
  $region6: #{tpu_custom_call.1} parent=0 // loop_footer
    %s19 = sadd.s32 1, %s15
  $region7: #{tpu_custom_call.1} parent=0 // loop_footer_branch
    %14 = sbr.rel target = $region3
  $region8: #{tpu_custom_call.1} parent=0 // loop_exit
    _

</llo_original>
